<compile_context>
chip_gen: v6e
topology: v6e:2x2x1
jax: 0.10.0
libtpu: 0.0.40
codegen_flags: <defaults>
</compile_context>

<pallas_src>
import math

import numpy as np
import jax
import jax.numpy as jnp
from jax.experimental import pallas as pl
from jax.experimental.pallas import tpu as pltpu

# ---- model dimensions (small synthetic sizes) --------------------------------
BATCH = 2
SEQ = 8
INPUT_DIM = 64
HIDDEN = 32
NUM_HEADS = 4
HEAD_DIM = HIDDEN // NUM_HEADS
FF_DIM = HIDDEN * 4
REG_DIM = HIDDEN // 2
ROWS = BATCH * SEQ            # 16 rows, batch-major then seq
LN_EPS = 1e-5
_SQRT2 = math.sqrt(2.0)
NEG_INF = -1e30               # finite mask value (avoids exp(-inf - -inf) NaNs)

# ---- packed parameter slab: one (SLAB_ROWS, 128) f32 array -------------------
SLAB_LANES = 128
R_W_IN = 0                        # (64, 32)
R_W_QKV = R_W_IN + INPUT_DIM      # 64  (32, 96)  q-third pre-scaled by 1/sqrt(HEAD_DIM)
R_W_O = R_W_QKV + HIDDEN          # 96  (32, 32)
R_W_FF1 = R_W_O + HIDDEN          # 128 (32, 128)
R_W_FF2 = R_W_FF1 + HIDDEN        # 160 (128, 32)
R_W_R1 = R_W_FF2 + FF_DIM         # 288 (32, 16)
R_W_R2 = R_W_R1 + HIDDEN          # 320 (16, 128) lane-broadcast of (16,1)
R_SMALL = R_W_R2 + REG_DIM        # 336 (16, 128) biases / LN params / head masks
R_BMASK = R_SMALL + 16            # 352 (64, 16)  batch mask tiled 4x on sublanes
R_PAVG = R_BMASK + NUM_HEADS * ROWS   # 416 (8, 16) mean-pool matrix (rows 2..7 zero)
SLAB_ROWS = R_PAVG + 8            # 424

# row offsets inside the "small" (16,128) block
S_B_IN, S_B_QKV, S_B_O = 0, 1, 2
S_LN1_G, S_LN1_B, S_LN2_G, S_LN2_B = 3, 4, 5, 6
S_B_FF1, S_B_FF2, S_B_R1, S_B_R2 = 7, 8, 9, 10
S_HM = 12                         # (4, 32) per-head lane masks, rows 12..15


def _gelu_exact(x):
    # nn.GELU default = exact erf-based GELU
    return 0.5 * x * (1.0 + jax.lax.erf(x / _SQRT2))


def _layernorm(x, gamma, beta):
    mu = jnp.mean(x, axis=-1, keepdims=True)
    var = jnp.mean((x - mu) ** 2, axis=-1, keepdims=True)
    return (x - mu) / jnp.sqrt(var + LN_EPS) * gamma + beta


def drift_kernel(x_ref, slab_ref, out_ref):
    x = x_ref[...]                                               # (16, 64)

    # ---- parameter views (static slices of the VMEM-resident slab) ----------
    w_in = slab_ref[R_W_IN:R_W_IN + INPUT_DIM, 0:HIDDEN]
    w_qkv = slab_ref[R_W_QKV:R_W_QKV + HIDDEN, 0:3 * HIDDEN]
    w_o = slab_ref[R_W_O:R_W_O + HIDDEN, 0:HIDDEN]
    w_ff1 = slab_ref[R_W_FF1:R_W_FF1 + HIDDEN, 0:FF_DIM]
    w_ff2 = slab_ref[R_W_FF2:R_W_FF2 + FF_DIM, 0:HIDDEN]
    w_r1 = slab_ref[R_W_R1:R_W_R1 + HIDDEN, 0:REG_DIM]
    w_r2 = slab_ref[R_W_R2:R_W_R2 + REG_DIM, :]                   # (16, 128) lane-broadcast
    bmask = slab_ref[R_BMASK:R_BMASK + NUM_HEADS * ROWS, 0:ROWS]  # (64, 16)
    p_avg = slab_ref[R_PAVG:R_PAVG + 8, 0:ROWS]                   # (8, 16)
    small = slab_ref[R_SMALL:R_SMALL + 16, :]                     # (16, 128)

    b_in = small[S_B_IN:S_B_IN + 1, 0:HIDDEN]
    b_qkv = small[S_B_QKV:S_B_QKV + 1, 0:3 * HIDDEN]
    b_o = small[S_B_O:S_B_O + 1, 0:HIDDEN]
    ln1_g = small[S_LN1_G:S_LN1_G + 1, 0:HIDDEN]
    ln1_b = small[S_LN1_B:S_LN1_B + 1, 0:HIDDEN]
    ln2_g = small[S_LN2_G:S_LN2_G + 1, 0:HIDDEN]
    ln2_b = small[S_LN2_B:S_LN2_B + 1, 0:HIDDEN]
    b_ff1 = small[S_B_FF1:S_B_FF1 + 1, 0:FF_DIM]
    b_ff2 = small[S_B_FF2:S_B_FF2 + 1, 0:HIDDEN]
    b_r1 = small[S_B_R1:S_B_R1 + 1, 0:REG_DIM]
    b_r2 = small[S_B_R2:S_B_R2 + 1, :]                            # (1, 128)
    hm = small[S_HM:S_HM + NUM_HEADS, 0:HIDDEN]                   # (4, 32)

    # ---- input projection + fused QKV (q already pre-scaled) ----------------
    h = jnp.dot(x, w_in, preferred_element_type=jnp.float32) + b_in       # (16, 32)
    qkv = jnp.dot(h, w_qkv, preferred_element_type=jnp.float32) + b_qkv   # (16, 96)
    q = qkv[:, 0:HIDDEN]
    k = qkv[:, HIDDEN:2 * HIDDEN]
    v = qkv[:, 2 * HIDDEN:3 * HIDDEN]

    # ---- fully fused multi-head self-attention (no per-head loop) -----------
    # q replicated along sublanes and masked per head -> (64, 32); one score matmul
    # gives the (head, row) x col scores for both batches at once; cross-batch blocks
    # knocked out by the precomputed additive mask BEFORE the row-max subtraction.
    hm3 = hm.reshape(NUM_HEADS, 1, HIDDEN)                                 # (4, 1, 32)
    q_stack = (q[None, :, :] * hm3).reshape(NUM_HEADS * ROWS, HIDDEN)      # (64, 32)
    s = jax.lax.dot_general(q_stack, k, (((1,), (1,)), ((), ())),
                            preferred_element_type=jnp.float32)            # (64, 16)
    s = s + bmask
    s = s - jnp.max(s, axis=-1, keepdims=True)
    p = jnp.exp(s)
    p = p / jnp.sum(p, axis=-1, keepdims=True)                              # ONE softmax
    ctx_stack = jnp.dot(p, v, preferred_element_type=jnp.float32)          # (64, 32)
    ctx = jnp.sum(ctx_stack.reshape(NUM_HEADS, ROWS, HIDDEN) * hm3, axis=0)  # (16, 32)

    attn = jnp.dot(ctx, w_o, preferred_element_type=jnp.float32) + b_o     # (16, 32)

    # ---- norm1( attn + dropout(attn) ); dropout = identity at inference.
    # The PyTorch forward overwrote the residual with attn_output => norm1(attn+attn).
    x1 = _layernorm(attn + attn, ln1_g, ln1_b)

    # ---- feed-forward --------------------------------------------------------
    ff = _gelu_exact(jnp.dot(x1, w_ff1, preferred_element_type=jnp.float32) + b_ff1)
    ff = jnp.dot(ff, w_ff2, preferred_element_type=jnp.float32) + b_ff2
    x2 = _layernorm(x1 + ff, ln2_g, ln2_b)

    # ---- mean over sequence: precomputed averaging matmul (rows 2..7 zero) ---
    pooled = jnp.dot(p_avg, x2, preferred_element_type=jnp.float32)        # (8, 32)

    # ---- regression head; w_r2/b_r2 lane-broadcast -> lane-dense (8,128) store
    r = _gelu_exact(jnp.dot(pooled, w_r1, preferred_element_type=jnp.float32) + b_r1)
    r = jnp.dot(r, w_r2, preferred_element_type=jnp.float32) + b_r2        # (8, 128)
    out_ref[...] = jax.nn.sigmoid(r)
    # TODO(synk): the module's one-time host-side debug print has no kernel equivalent.


def init_raw_params(key):
    """Deterministic synthetic parameters (PyTorch-Linear-style uniform init)."""
    keys = jax.random.split(key, 9)

    def lin(k, fan_in, fan_out):
        kw, kb = jax.random.split(k)
        bound = 1.0 / math.sqrt(fan_in)
        w = jax.random.uniform(kw, (fan_in, fan_out), jnp.float32, -bound, bound)
        b = jax.random.uniform(kb, (1, fan_out), jnp.float32, -bound, bound)
        return w, b

    p = {}
    p["w_in"], p["b_in"] = lin(keys[0], INPUT_DIM, HIDDEN)
    p["w_q"], p["b_q"] = lin(keys[1], HIDDEN, HIDDEN)
    p["w_k"], p["b_k"] = lin(keys[2], HIDDEN, HIDDEN)
    p["w_v"], p["b_v"] = lin(keys[3], HIDDEN, HIDDEN)
    p["w_o"], p["b_o"] = lin(keys[4], HIDDEN, HIDDEN)
    p["ln1_g"] = jnp.ones((1, HIDDEN), jnp.float32)
    p["ln1_b"] = jnp.zeros((1, HIDDEN), jnp.float32)
    p["ln2_g"] = jnp.ones((1, HIDDEN), jnp.float32)
    p["ln2_b"] = jnp.zeros((1, HIDDEN), jnp.float32)
    p["w_ff1"], p["b_ff1"] = lin(keys[5], HIDDEN, FF_DIM)
    p["w_ff2"], p["b_ff2"] = lin(keys[6], FF_DIM, HIDDEN)
    p["w_r1"], p["b_r1"] = lin(keys[7], HIDDEN, REG_DIM)
    p["w_r2"], p["b_r2"] = lin(keys[8], REG_DIM, 1)
    return p


def pack_slab(p):
    """Fuse QKV (query scale folded in) and pack every weight, bias, LayerNorm vector
    plus the precomputed attention/pooling constants into one lane-dense f32 slab."""
    scale = 1.0 / math.sqrt(HEAD_DIM)
    slab = np.zeros((SLAB_ROWS, SLAB_LANES), np.float32)

    def put(row, val):
        val = np.asarray(val, np.float32)
        slab[row:row + val.shape[0], :val.shape[1]] = val

    w_qkv = np.concatenate([np.asarray(p["w_q"]) * scale,
                            np.asarray(p["w_k"]), np.asarray(p["w_v"])], axis=1)
    b_qkv = np.concatenate([np.asarray(p["b_q"]) * scale,
                            np.asarray(p["b_k"]), np.asarray(p["b_v"])], axis=1)

    put(R_W_IN, p["w_in"]); put(R_W_QKV, w_qkv); put(R_W_O, p["w_o"])
    put(R_W_FF1, p["w_ff1"]); put(R_W_FF2, p["w_ff2"]); put(R_W_R1, p["w_r1"])
    put(R_W_R2, np.broadcast_to(np.asarray(p["w_r2"]), (REG_DIM, SLAB_LANES)))

    put(R_SMALL + S_B_IN, p["b_in"]); put(R_SMALL + S_B_QKV, b_qkv)
    put(R_SMALL + S_B_O, p["b_o"])
    put(R_SMALL + S_LN1_G, p["ln1_g"]); put(R_SMALL + S_LN1_B, p["ln1_b"])
    put(R_SMALL + S_LN2_G, p["ln2_g"]); put(R_SMALL + S_LN2_B, p["ln2_b"])
    put(R_SMALL + S_B_FF1, p["b_ff1"]); put(R_SMALL + S_B_FF2, p["b_ff2"])
    put(R_SMALL + S_B_R1, p["b_r1"])
    put(R_SMALL + S_B_R2, np.broadcast_to(np.asarray(p["b_r2"]), (1, SLAB_LANES)))

    # per-head lane masks (4, 32)
    lane = np.arange(HIDDEN)
    hm = (lane[None, :] // HEAD_DIM == np.arange(NUM_HEADS)[:, None]).astype(np.float32)
    put(R_SMALL + S_HM, hm)

    # cross-batch additive mask, tiled NUM_HEADS x on sublanes -> (64, 16)
    rows = np.arange(ROWS)
    bm = np.where(rows[:, None] // SEQ == rows[None, :] // SEQ, 0.0, NEG_INF)
    put(R_BMASK, np.tile(bm.astype(np.float32), (NUM_HEADS, 1)))

    # mean-pool matrix padded to 8 rows (rows >= BATCH are zero) -> (8, 16)
    pa = np.zeros((8, ROWS), np.float32)
    for b in range(BATCH):
        pa[b, b * SEQ:(b + 1) * SEQ] = 1.0 / SEQ
    put(R_PAVG, pa)

    return jnp.asarray(slab)


def enhanced_topic_drift_forward(x_flat, slab):
    """x_flat: (BATCH, 8*INPUT_DIM) -> drift score (BATCH, 1)."""
    # (B, 8*D) -> (B*8, D), row-major batch-then-seq (glue reshape, plain JAX)
    x2d = x_flat.reshape(ROWS, INPUT_DIM)
    # Gridless call: no pipeline machinery, whole arrays copied once into VMEM
    # (x 4 KiB + slab ~212 KiB + out 4 KiB — fits every generation's VMEM).
    out = pl.pallas_call(
        drift_kernel,
        out_shape=jax.ShapeDtypeStruct((8, SLAB_LANES), jnp.float32),
        in_specs=[pl.BlockSpec(memory_space=pltpu.MemorySpace.VMEM),
                  pl.BlockSpec(memory_space=pltpu.MemorySpace.VMEM)],
        out_specs=pl.BlockSpec(memory_space=pltpu.MemorySpace.VMEM),
    )(x2d, slab)
    return out[:BATCH, :1]
    # TODO(synk): for large example counts, add a leading "parallel" grid axis over
    # example tiles (weights index_map constant) to shard across v7x's two TensorCores.


def reference_forward(x_flat, p):
    """Pure-JAX reference reproducing the PyTorch forward (inference)."""
    scale = 1.0 / math.sqrt(HEAD_DIM)
    x = x_flat.reshape(BATCH, SEQ, INPUT_DIM)
    h = x @ p["w_in"] + p["b_in"]
    q = h @ p["w_q"] + p["b_q"]
    k = h @ p["w_k"] + p["b_k"]
    v = h @ p["w_v"] + p["b_v"]

    def split(t):
        return t.reshape(BATCH, SEQ, NUM_HEADS, HEAD_DIM).transpose(0, 2, 1, 3)

    qh, kh, vh = split(q) * scale, split(k), split(v)
    s = jnp.einsum('bhqd,bhkd->bhqk', qh, kh)
    pa = jax.nn.softmax(s, axis=-1)
    ctx = jnp.einsum('bhqk,bhkd->bhqd', pa, vh)
    ctx = ctx.transpose(0, 2, 1, 3).reshape(BATCH, SEQ, HIDDEN)
    attn = ctx @ p["w_o"] + p["b_o"]

    def ln(t, g, b):
        mu = t.mean(-1, keepdims=True)
        var = ((t - mu) ** 2).mean(-1, keepdims=True)
        return (t - mu) / jnp.sqrt(var + LN_EPS) * g + b

    def gelu(t):
        return 0.5 * t * (1.0 + jax.lax.erf(t / _SQRT2))

    x1 = ln(attn + attn, p["ln1_g"], p["ln1_b"])          # residual overwritten in torch fwd
    ff = gelu(x1 @ p["w_ff1"] + p["b_ff1"]) @ p["w_ff2"] + p["b_ff2"]
    x2 = ln(x1 + ff, p["ln2_g"], p["ln2_b"])
    pooled = x2.mean(axis=1)
    r = gelu(pooled @ p["w_r1"] + p["b_r1"]) @ p["w_r2"] + p["b_r2"]
    return jax.nn.sigmoid(r)


if __name__ == "__main__":
    key = jax.random.PRNGKey(0)
    kx, kp = jax.random.split(key)
    x = jax.random.normal(kx, (BATCH, SEQ * INPUT_DIM), jnp.float32)
    params = init_raw_params(kp)
    slab = pack_slab(params)

    out = enhanced_topic_drift_forward(x, slab)
    out = jax.block_until_ready(out)

    assert out.shape == (BATCH, 1), out.shape
    assert bool(jnp.all(jnp.isfinite(out)))
    assert bool(jnp.all((out >= 0.0) & (out <= 1.0)))     # sigmoid output range

    ref = jax.block_until_ready(reference_forward(x, params))
    assert bool(jnp.allclose(out, ref, atol=1e-3, rtol=1e-3)), (out, ref)
    print("KERNEL_OK")
</pallas_src>

<mosaic_0001>
module attributes {stable_mosaic.version = 11 : i64} {
  func.func @drift_kernel(%arg0: memref<16x64xf32, #tpu.memory_space<vmem>>, %arg1: memref<424x128xf32, #tpu.memory_space<vmem>>, %arg2: memref<8x128xf32, #tpu.memory_space<vmem>>) attributes {dimension_semantics = [], scalar_prefetch = 0 : i64, scratch_operands = 0 : i64, tpu.core_type = #tpu.core_type<tc>} {
    %c0 = arith.constant 0 : index
    %c0_0 = arith.constant 0 : index
    %0 = vector.load %arg0[%c0, %c0_0] : memref<16x64xf32, #tpu.memory_space<vmem>>, vector<16x64xf32>
    %c0_1 = arith.constant 0 : index
    %c0_2 = arith.constant 0 : index
    %1 = vector.load %arg1[%c0_1, %c0_2] : memref<424x128xf32, #tpu.memory_space<vmem>>, vector<64x32xf32>
    %c64 = arith.constant 64 : index
    %c0_3 = arith.constant 0 : index
    %2 = vector.load %arg1[%c64, %c0_3] : memref<424x128xf32, #tpu.memory_space<vmem>>, vector<32x96xf32>
    %c96 = arith.constant 96 : index
    %c0_4 = arith.constant 0 : index
    %3 = vector.load %arg1[%c96, %c0_4] : memref<424x128xf32, #tpu.memory_space<vmem>>, vector<32x32xf32>
    %c128 = arith.constant 128 : index
    %c0_5 = arith.constant 0 : index
    %4 = vector.load %arg1[%c128, %c0_5] : memref<424x128xf32, #tpu.memory_space<vmem>>, vector<32x128xf32>
    %c160 = arith.constant 160 : index
    %c0_6 = arith.constant 0 : index
    %5 = vector.load %arg1[%c160, %c0_6] : memref<424x128xf32, #tpu.memory_space<vmem>>, vector<128x32xf32>
    %c288 = arith.constant 288 : index
    %c0_7 = arith.constant 0 : index
    %6 = vector.load %arg1[%c288, %c0_7] : memref<424x128xf32, #tpu.memory_space<vmem>>, vector<32x16xf32>
    %c320 = arith.constant 320 : index
    %c0_8 = arith.constant 0 : index
    %7 = vector.load %arg1[%c320, %c0_8] : memref<424x128xf32, #tpu.memory_space<vmem>>, vector<16x128xf32>
    %c352 = arith.constant 352 : index
    %c0_9 = arith.constant 0 : index
    %8 = vector.load %arg1[%c352, %c0_9] : memref<424x128xf32, #tpu.memory_space<vmem>>, vector<64x16xf32>
    %c416 = arith.constant 416 : index
    %c0_10 = arith.constant 0 : index
    %9 = vector.load %arg1[%c416, %c0_10] : memref<424x128xf32, #tpu.memory_space<vmem>>, vector<8x16xf32>
    %c336 = arith.constant 336 : index
    %c0_11 = arith.constant 0 : index
    %10 = vector.load %arg1[%c336, %c0_11] : memref<424x128xf32, #tpu.memory_space<vmem>>, vector<16x128xf32>
    %11 = vector.extract_strided_slice %10 {offsets = [0, 0], sizes = [1, 32], strides = [1, 1]} : vector<16x128xf32> to vector<1x32xf32>
    %12 = vector.extract_strided_slice %10 {offsets = [1, 0], sizes = [1, 96], strides = [1, 1]} : vector<16x128xf32> to vector<1x96xf32>
    %13 = vector.extract_strided_slice %10 {offsets = [2, 0], sizes = [1, 32], strides = [1, 1]} : vector<16x128xf32> to vector<1x32xf32>
    %14 = vector.extract_strided_slice %10 {offsets = [3, 0], sizes = [1, 32], strides = [1, 1]} : vector<16x128xf32> to vector<1x32xf32>
    %15 = vector.extract_strided_slice %10 {offsets = [4, 0], sizes = [1, 32], strides = [1, 1]} : vector<16x128xf32> to vector<1x32xf32>
    %16 = vector.extract_strided_slice %10 {offsets = [5, 0], sizes = [1, 32], strides = [1, 1]} : vector<16x128xf32> to vector<1x32xf32>
    %17 = vector.extract_strided_slice %10 {offsets = [6, 0], sizes = [1, 32], strides = [1, 1]} : vector<16x128xf32> to vector<1x32xf32>
    %18 = vector.extract_strided_slice %10 {offsets = [7, 0], sizes = [1, 128], strides = [1, 1]} : vector<16x128xf32> to vector<1x128xf32>
    %19 = vector.extract_strided_slice %10 {offsets = [8, 0], sizes = [1, 32], strides = [1, 1]} : vector<16x128xf32> to vector<1x32xf32>
    %20 = vector.extract_strided_slice %10 {offsets = [9, 0], sizes = [1, 16], strides = [1, 1]} : vector<16x128xf32> to vector<1x16xf32>
    %21 = vector.extract_strided_slice %10 {offsets = [10, 0], sizes = [1, 128], strides = [1, 1]} : vector<16x128xf32> to vector<1x128xf32>
    %22 = vector.extract_strided_slice %10 {offsets = [12, 0], sizes = [4, 32], strides = [1, 1]} : vector<16x128xf32> to vector<4x32xf32>
    %cst = arith.constant dense<0.000000e+00> : vector<16x32xf32>
    %23 = tpu.matmul %0, %1, %cst {dimension_numbers = #tpu.dot_dimension_numbers<[1], [0], [0], [1], [0, 0, 1, 1], [], []>} : vector<16x64xf32>, vector<64x32xf32>, vector<16x32xf32> -> vector<16x32xf32>
    %24 = vector.broadcast %11 : vector<1x32xf32> to vector<16x32xf32>
    %25 = arith.addf %23, %24 : vector<16x32xf32>
    %cst_12 = arith.constant dense<0.000000e+00> : vector<16x96xf32>
    %26 = tpu.matmul %25, %2, %cst_12 {dimension_numbers = #tpu.dot_dimension_numbers<[1], [0], [0], [1], [0, 0, 1, 1], [], []>} : vector<16x32xf32>, vector<32x96xf32>, vector<16x96xf32> -> vector<16x96xf32>
    %27 = vector.broadcast %12 : vector<1x96xf32> to vector<16x96xf32>
    %28 = arith.addf %26, %27 : vector<16x96xf32>
    %29 = vector.extract_strided_slice %28 {offsets = [0, 0], sizes = [16, 32], strides = [1, 1]} : vector<16x96xf32> to vector<16x32xf32>
    %30 = vector.extract_strided_slice %28 {offsets = [0, 32], sizes = [16, 32], strides = [1, 1]} : vector<16x96xf32> to vector<16x32xf32>
    %31 = vector.extract_strided_slice %28 {offsets = [0, 64], sizes = [16, 32], strides = [1, 1]} : vector<16x96xf32> to vector<16x32xf32>
    %32 = vector.shape_cast %22 : vector<4x32xf32> to vector<4x1x32xf32>
    %33 = vector.shape_cast %29 : vector<16x32xf32> to vector<1x16x32xf32>
    %34 = vector.broadcast %33 : vector<1x16x32xf32> to vector<4x16x32xf32>
    %35 = vector.broadcast %32 : vector<4x1x32xf32> to vector<4x16x32xf32>
    %36 = arith.mulf %34, %35 : vector<4x16x32xf32>
    %37 = vector.shape_cast %36 : vector<4x16x32xf32> to vector<64x32xf32>
    %cst_13 = arith.constant dense<0.000000e+00> : vector<64x16xf32>
    %38 = tpu.matmul %37, %30, %cst_13 {dimension_numbers = #tpu.dot_dimension_numbers<[1], [1], [0], [0], [0, 0, 1, 0], [], []>} : vector<64x32xf32>, vector<16x32xf32>, vector<64x16xf32> -> vector<64x16xf32>
    %39 = arith.addf %38, %8 : vector<64x16xf32>
    %cst_14 = arith.constant dense<0xFF800000> : vector<64xf32>
    %40 = vector.multi_reduction <maximumf>, %39, %cst_14 [1] : vector<64x16xf32> to vector<64xf32>
    %41 = vector.shape_cast %40 : vector<64xf32> to vector<64x1xf32>
    %42 = vector.broadcast %41 : vector<64x1xf32> to vector<64x16xf32>
    %43 = arith.subf %39, %42 : vector<64x16xf32>
    %44 = math.exp %43 : vector<64x16xf32>
    %cst_15 = arith.constant dense<0.000000e+00> : vector<64xf32>
    %45 = vector.multi_reduction <add>, %44, %cst_15 [1] : vector<64x16xf32> to vector<64xf32>
    %46 = vector.shape_cast %45 : vector<64xf32> to vector<64x1xf32>
    %47 = vector.broadcast %46 : vector<64x1xf32> to vector<64x16xf32>
    %48 = arith.divf %44, %47 : vector<64x16xf32>
    %cst_16 = arith.constant dense<0.000000e+00> : vector<64x32xf32>
    %49 = tpu.matmul %48, %31, %cst_16 {dimension_numbers = #tpu.dot_dimension_numbers<[1], [0], [0], [1], [0, 0, 1, 1], [], []>} : vector<64x16xf32>, vector<16x32xf32>, vector<64x32xf32> -> vector<64x32xf32>
    %50 = vector.shape_cast %49 : vector<64x32xf32> to vector<4x16x32xf32>
    %51 = vector.broadcast %32 : vector<4x1x32xf32> to vector<4x16x32xf32>
    %52 = arith.mulf %50, %51 : vector<4x16x32xf32>
    %cst_17 = arith.constant dense<0.000000e+00> : vector<16x32xf32>
    %53 = vector.multi_reduction <add>, %52, %cst_17 [0] : vector<4x16x32xf32> to vector<16x32xf32>
    %cst_18 = arith.constant dense<0.000000e+00> : vector<16x32xf32>
    %54 = tpu.matmul %53, %3, %cst_18 {dimension_numbers = #tpu.dot_dimension_numbers<[1], [0], [0], [1], [0, 0, 1, 1], [], []>} : vector<16x32xf32>, vector<32x32xf32>, vector<16x32xf32> -> vector<16x32xf32>
    %55 = vector.broadcast %13 : vector<1x32xf32> to vector<16x32xf32>
    %56 = arith.addf %54, %55 : vector<16x32xf32>
    %57 = arith.addf %56, %56 : vector<16x32xf32>
    %cst_19 = arith.constant dense<0.000000e+00> : vector<16xf32>
    %58 = vector.multi_reduction <add>, %57, %cst_19 [1] : vector<16x32xf32> to vector<16xf32>
    %59 = vector.shape_cast %58 : vector<16xf32> to vector<16x1xf32>
    %cst_20 = arith.constant 3.200000e+01 : f32
    %60 = vector.broadcast %cst_20 : f32 to vector<16x1xf32>
    %61 = arith.divf %59, %60 : vector<16x1xf32>
    %62 = vector.broadcast %61 : vector<16x1xf32> to vector<16x32xf32>
    %63 = arith.subf %57, %62 : vector<16x32xf32>
    %64 = arith.mulf %63, %63 : vector<16x32xf32>
    %cst_21 = arith.constant dense<0.000000e+00> : vector<16xf32>
    %65 = vector.multi_reduction <add>, %64, %cst_21 [1] : vector<16x32xf32> to vector<16xf32>
    %66 = vector.shape_cast %65 : vector<16xf32> to vector<16x1xf32>
    %cst_22 = arith.constant 3.200000e+01 : f32
    %67 = vector.broadcast %cst_22 : f32 to vector<16x1xf32>
    %68 = arith.divf %66, %67 : vector<16x1xf32>
    %69 = vector.broadcast %61 : vector<16x1xf32> to vector<16x32xf32>
    %70 = arith.subf %57, %69 : vector<16x32xf32>
    %cst_23 = arith.constant 9.99999974E-6 : f32
    %71 = vector.broadcast %cst_23 : f32 to vector<16x1xf32>
    %72 = arith.addf %68, %71 : vector<16x1xf32>
    %73 = math.sqrt %72 : vector<16x1xf32>
    %74 = vector.broadcast %73 : vector<16x1xf32> to vector<16x32xf32>
    %75 = arith.divf %70, %74 : vector<16x32xf32>
    %76 = vector.broadcast %14 : vector<1x32xf32> to vector<16x32xf32>
    %77 = arith.mulf %75, %76 : vector<16x32xf32>
    %78 = vector.broadcast %15 : vector<1x32xf32> to vector<16x32xf32>
    %79 = arith.addf %77, %78 : vector<16x32xf32>
    %cst_24 = arith.constant dense<0.000000e+00> : vector<16x128xf32>
    %80 = tpu.matmul %79, %4, %cst_24 {dimension_numbers = #tpu.dot_dimension_numbers<[1], [0], [0], [1], [0, 0, 1, 1], [], []>} : vector<16x32xf32>, vector<32x128xf32>, vector<16x128xf32> -> vector<16x128xf32>
    %81 = vector.broadcast %18 : vector<1x128xf32> to vector<16x128xf32>
    %82 = arith.addf %80, %81 : vector<16x128xf32>
    %cst_25 = arith.constant 5.000000e-01 : f32
    %83 = vector.broadcast %cst_25 : f32 to vector<16x128xf32>
    %84 = arith.mulf %83, %82 : vector<16x128xf32>
    %cst_26 = arith.constant 1.41421354 : f32
    %85 = vector.broadcast %cst_26 : f32 to vector<16x128xf32>
    %86 = arith.divf %82, %85 : vector<16x128xf32>
    %87 = math.erf %86 : vector<16x128xf32>
    %cst_27 = arith.constant 1.000000e+00 : f32
    %88 = vector.broadcast %cst_27 : f32 to vector<16x128xf32>
    %89 = arith.addf %88, %87 : vector<16x128xf32>
    %90 = arith.mulf %84, %89 : vector<16x128xf32>
    %cst_28 = arith.constant dense<0.000000e+00> : vector<16x32xf32>
    %91 = tpu.matmul %90, %5, %cst_28 {dimension_numbers = #tpu.dot_dimension_numbers<[1], [0], [0], [1], [0, 0, 1, 1], [], []>} : vector<16x128xf32>, vector<128x32xf32>, vector<16x32xf32> -> vector<16x32xf32>
    %92 = vector.broadcast %19 : vector<1x32xf32> to vector<16x32xf32>
    %93 = arith.addf %91, %92 : vector<16x32xf32>
    %94 = arith.addf %79, %93 : vector<16x32xf32>
    %cst_29 = arith.constant dense<0.000000e+00> : vector<16xf32>
    %95 = vector.multi_reduction <add>, %94, %cst_29 [1] : vector<16x32xf32> to vector<16xf32>
    %96 = vector.shape_cast %95 : vector<16xf32> to vector<16x1xf32>
    %cst_30 = arith.constant 3.200000e+01 : f32
    %97 = vector.broadcast %cst_30 : f32 to vector<16x1xf32>
    %98 = arith.divf %96, %97 : vector<16x1xf32>
    %99 = vector.broadcast %98 : vector<16x1xf32> to vector<16x32xf32>
    %100 = arith.subf %94, %99 : vector<16x32xf32>
    %101 = arith.mulf %100, %100 : vector<16x32xf32>
    %cst_31 = arith.constant dense<0.000000e+00> : vector<16xf32>
    %102 = vector.multi_reduction <add>, %101, %cst_31 [1] : vector<16x32xf32> to vector<16xf32>
    %103 = vector.shape_cast %102 : vector<16xf32> to vector<16x1xf32>
    %cst_32 = arith.constant 3.200000e+01 : f32
    %104 = vector.broadcast %cst_32 : f32 to vector<16x1xf32>
    %105 = arith.divf %103, %104 : vector<16x1xf32>
    %106 = vector.broadcast %98 : vector<16x1xf32> to vector<16x32xf32>
    %107 = arith.subf %94, %106 : vector<16x32xf32>
    %cst_33 = arith.constant 9.99999974E-6 : f32
    %108 = vector.broadcast %cst_33 : f32 to vector<16x1xf32>
    %109 = arith.addf %105, %108 : vector<16x1xf32>
    %110 = math.sqrt %109 : vector<16x1xf32>
    %111 = vector.broadcast %110 : vector<16x1xf32> to vector<16x32xf32>
    %112 = arith.divf %107, %111 : vector<16x32xf32>
    %113 = vector.broadcast %16 : vector<1x32xf32> to vector<16x32xf32>
    %114 = arith.mulf %112, %113 : vector<16x32xf32>
    %115 = vector.broadcast %17 : vector<1x32xf32> to vector<16x32xf32>
    %116 = arith.addf %114, %115 : vector<16x32xf32>
    %cst_34 = arith.constant dense<0.000000e+00> : vector<8x32xf32>
    %117 = tpu.matmul %9, %116, %cst_34 {dimension_numbers = #tpu.dot_dimension_numbers<[1], [0], [0], [1], [0, 0, 1, 1], [], []>} : vector<8x16xf32>, vector<16x32xf32>, vector<8x32xf32> -> vector<8x32xf32>
    %cst_35 = arith.constant dense<0.000000e+00> : vector<8x16xf32>
    %118 = tpu.matmul %117, %6, %cst_35 {dimension_numbers = #tpu.dot_dimension_numbers<[1], [0], [0], [1], [0, 0, 1, 1], [], []>} : vector<8x32xf32>, vector<32x16xf32>, vector<8x16xf32> -> vector<8x16xf32>
    %119 = vector.broadcast %20 : vector<1x16xf32> to vector<8x16xf32>
    %120 = arith.addf %118, %119 : vector<8x16xf32>
    %cst_36 = arith.constant 5.000000e-01 : f32
    %121 = vector.broadcast %cst_36 : f32 to vector<8x16xf32>
    %122 = arith.mulf %121, %120 : vector<8x16xf32>
    %cst_37 = arith.constant 1.41421354 : f32
    %123 = vector.broadcast %cst_37 : f32 to vector<8x16xf32>
    %124 = arith.divf %120, %123 : vector<8x16xf32>
    %125 = math.erf %124 : vector<8x16xf32>
    %cst_38 = arith.constant 1.000000e+00 : f32
    %126 = vector.broadcast %cst_38 : f32 to vector<8x16xf32>
    %127 = arith.addf %126, %125 : vector<8x16xf32>
    %128 = arith.mulf %122, %127 : vector<8x16xf32>
    %cst_39 = arith.constant dense<0.000000e+00> : vector<8x128xf32>
    %129 = tpu.matmul %128, %7, %cst_39 {dimension_numbers = #tpu.dot_dimension_numbers<[1], [0], [0], [1], [0, 0, 1, 1], [], []>} : vector<8x16xf32>, vector<16x128xf32>, vector<8x128xf32> -> vector<8x128xf32>
    %130 = vector.broadcast %21 : vector<1x128xf32> to vector<8x128xf32>
    %131 = arith.addf %129, %130 : vector<8x128xf32>
    %132 = arith.negf %131 : vector<8x128xf32>
    %133 = math.exp %132 : vector<8x128xf32>
    %cst_40 = arith.constant 1.000000e+00 : f32
    %134 = vector.broadcast %cst_40 : f32 to vector<8x128xf32>
    %135 = arith.addf %134, %133 : vector<8x128xf32>
    %136 = arith.divf %134, %135 : vector<8x128xf32>
    %c0_41 = arith.constant 0 : index
    %c0_42 = arith.constant 0 : index
    %137 = vector.load %arg2[%c0_41, %c0_42] : memref<8x128xf32, #tpu.memory_space<vmem>>, vector<8x128xf32>
    tpu.vector_store %arg2[%c0_41, %c0_42], %136 {strides = array<i32>} : memref<8x128xf32, #tpu.memory_space<vmem>>, vector<8x128xf32>,
    return
  }
}

</mosaic_0001>

<llo_original>
// kernel: tpu_custom_call.1
$region0: #{tpu_custom_call.1}
  #allocation0 [shape = 'u32[]', space=smem, size = 0x4, offset = 0x4, fixed_abs, tag = 'smem constant byte address 0x4 - core index']
  #allocation1 [shape = 'u32[144,128]{1,0:T(1,128)}', space=vmem, size = 0x12000, scoped, tag = 'internal scratch']
  %s0 = inlined_call_operand.hbm [shape: f32[16,64], index: 0, kind: input, shape index: {}]
  %s1 = inlined_call_operand.hbm [shape: f32[424,128], index: 1, kind: input, shape index: {}]
  %s2 = inlined_call_operand.hbm [shape: f32[8,128], index: 2, kind: output, shape index: {}]
  %s3 = sld [smem:[#allocation0]]
  $region26: #{tpu_custom_call.1} parent=0
    _
  %s5 = ssub.s32 1, %s3
  %s6 = scalar_select 0, %s5, %s3
  $region1: #{tpu_custom_call.1} parent=0
    #allocation2 [shape = 'u8[8192]{0}', space=vmem, size = 0x2000, scoped, tag = 'input window, operand 0, single buffered']
    #allocation3 [shape = 's32[1]{0}', space=sflag, size = 0x4, scoped, tag = 'scoped memory for tpu_custom_call.1']
    #allocation4 [shape = 's32[1]{0}', space=sflag, size = 0x4, scoped, tag = 'scoped memory for tpu_custom_call.1']
    #allocation5 [shape = 'u8[217088]{0}', space=vmem, size = 0x35000, scoped, tag = 'input window, operand 1, single buffered']
    #allocation6 [shape = 's32[1]{0}', space=sflag, size = 0x4, scoped, tag = 'scoped memory for tpu_custom_call.1']
    #allocation7 [shape = 'u8[4096]{0}', space=vmem, size = 0x1000, scoped, tag = 'output window, operand 0, single buffered']
    %7 = vsyncpa [#allocation3], 0
    %8 = vsyncpa [#allocation6], 0
    %9 = vsyncpa [#allocation4], 0
    // Predicated region
    $region2: #{tpu_custom_call.1} parent=1 // pred_check
      _
    $region3: #{tpu_custom_call.1} parent=1 // pred_check_branch
      %11 = sbr.rel (0) target = $region5
    $region4: #{tpu_custom_call.1} parent=1 // pred_region
      %s13 = ssub.s32 256, 256
      %14 = vsyncadd [#allocation3], %s13
      %s15 = sshll.u32 [#allocation2], 4
      %s16 = int_to_ptr.vmem [resolvable:$true] %s15
      %21 = dma.hbm_to_vmem [thread:$0]  %s0, 256, %s16, [#allocation3], 128, 128, 8
    $region5: #{tpu_custom_call.1} parent=1 // pred_fallthru
      _
    // Predicated region
    $region6: #{tpu_custom_call.1} parent=1 // pred_check
      _
    $region7: #{tpu_custom_call.1} parent=1 // pred_check_branch
      %23 = sbr.rel (0) target = $region9
    $region8: #{tpu_custom_call.1} parent=1 // pred_region
      %s25 = ssub.s32 6784, 6784
      %26 = vsyncadd [#allocation6], %s25
      %s27 = sshll.u32 [#allocation5], 4
      %s28 = int_to_ptr.vmem [resolvable:$true] %s27
      %33 = dma.hbm_to_vmem [thread:$0]  %s1, 6784, %s28, [#allocation6], 128, 128, 8
    $region9: #{tpu_custom_call.1} parent=1 // pred_fallthru
      _
    // Predicated region
    $region10: #{tpu_custom_call.1} parent=1 // pred_check
      _
    $region11: #{tpu_custom_call.1} parent=1 // pred_check_branch
      %35 = sbr.rel (0) target = $region13
    $region12: #{tpu_custom_call.1} parent=1 // pred_region
      %36 = dma.done [#allocation3], 256
    $region13: #{tpu_custom_call.1} parent=1 // pred_fallthru
      _
    // Predicated region
    $region14: #{tpu_custom_call.1} parent=1 // pred_check
      _
    $region15: #{tpu_custom_call.1} parent=1 // pred_check_branch
      %38 = sbr.rel (0) target = $region17
    $region16: #{tpu_custom_call.1} parent=1 // pred_region
      %39 = dma.done [#allocation6], 6784
    $region17: #{tpu_custom_call.1} parent=1 // pred_fallthru
      _
    %v40 = vld [vmem:[#allocation2] sm:$0xff]
    %v41 = vld [vmem:[#allocation2 + $0x8] sm:$0xff]
    %v42 = vld [vmem:[#allocation5] sm:$0xff]
    %v43 = vld [vmem:[#allocation5 + $0x8] sm:$0xff]
    %v44 = vld [vmem:[#allocation5 + $0x10] sm:$0xff]
    %v45 = vld [vmem:[#allocation5 + $0x18] sm:$0xff]
    %v46 = vld [vmem:[#allocation5 + $0x20] sm:$0xff]
    %v47 = vld [vmem:[#allocation5 + $0x28] sm:$0xff]
    %v48 = vld [vmem:[#allocation5 + $0x30] sm:$0xff]
    %v49 = vld [vmem:[#allocation5 + $0x38] sm:$0xff]
    %v50 = vld [vmem:[#allocation5 + $0x40] sm:$0xff]
    %v51 = vld [vmem:[#allocation5 + $0x48] sm:$0xff]
    %v52 = vld [vmem:[#allocation5 + $0x50] sm:$0xff]
    %v53 = vld [vmem:[#allocation5 + $0x58] sm:$0xff]
    %v54 = vld [vmem:[#allocation5 + $0x60] sm:$0xff]
    %v55 = vld [vmem:[#allocation5 + $0x68] sm:$0xff]
    %v56 = vld [vmem:[#allocation5 + $0x70] sm:$0xff]
    %v57 = vld [vmem:[#allocation5 + $0x78] sm:$0xff]
    %v58 = vld [vmem:[#allocation5 + $0x80] sm:$0xff]
    %v59 = vld [vmem:[#allocation5 + $0x88] sm:$0xff]
    %v60 = vld [vmem:[#allocation5 + $0x90] sm:$0xff]
    %v61 = vld [vmem:[#allocation5 + $0x98] sm:$0xff]
    %v62 = vld [vmem:[#allocation5 + $0xa0] sm:$0xff]
    %v63 = vld [vmem:[#allocation5 + $0xa8] sm:$0xff]
    %v64 = vld [vmem:[#allocation5 + $0xb0] sm:$0xff]
    %v65 = vld [vmem:[#allocation5 + $0xb8] sm:$0xff]
    %v66 = vld [vmem:[#allocation5 + $0xc0] sm:$0xff]
    %v67 = vld [vmem:[#allocation5 + $0xc8] sm:$0xff]
    %v68 = vld [vmem:[#allocation5 + $0xd0] sm:$0xff]
    %v69 = vld [vmem:[#allocation5 + $0xd8] sm:$0xff]
    %v70 = vld [vmem:[#allocation5 + $0xe0] sm:$0xff]
    %v71 = vld [vmem:[#allocation5 + $0xe8] sm:$0xff]
    %v72 = vld [vmem:[#allocation5 + $0xf0] sm:$0xff]
    %v73 = vld [vmem:[#allocation5 + $0xf8] sm:$0xff]
    %v74 = vld [vmem:[#allocation5 + $0x100] sm:$0xff]
    %v75 = vld [vmem:[#allocation5 + $0x108] sm:$0xff]
    %v76 = vld [vmem:[#allocation5 + $0x110] sm:$0xff]
    %v77 = vld [vmem:[#allocation5 + $0x118] sm:$0xff]
    %v78 = vld [vmem:[#allocation5 + $0x120] sm:$0xff]
    %v79 = vld [vmem:[#allocation5 + $0x128] sm:$0xff]
    %v80 = vld [vmem:[#allocation5 + $0x130] sm:$0xff]
    %v81 = vld [vmem:[#allocation5 + $0x138] sm:$0xff]
    %v82 = vld [vmem:[#allocation5 + $0x140] sm:$0xff]
    %v83 = vld [vmem:[#allocation5 + $0x148] sm:$0xff]
    %v84 = vld [vmem:[#allocation5 + $0x160] sm:$0xff]
    %v85 = vld [vmem:[#allocation5 + $0x168] sm:$0xff]
    %v86 = vld [vmem:[#allocation5 + $0x170] sm:$0xff]
    %v87 = vld [vmem:[#allocation5 + $0x178] sm:$0xff]
    %v88 = vld [vmem:[#allocation5 + $0x180] sm:$0xff]
    %v89 = vld [vmem:[#allocation5 + $0x188] sm:$0xff]
    %v90 = vld [vmem:[#allocation5 + $0x190] sm:$0xff]
    %v91 = vld [vmem:[#allocation5 + $0x198] sm:$0xff]
    %v92 = vld [vmem:[#allocation5 + $0x1a0] sm:$0xff]
    %v93 = vld [vmem:[#allocation5 + $0x150] sm:$0xff]
    %v94 = vld [vmem:[#allocation5 + $0x158] sm:$0xff]
    %v95 = vlaneseq
    %v96 = vshrl.u32 %v95, 7
    %v97 = vsub.s32 0, %v96
    %v98 = vrot.slane %v93, %v97
    %vm99 = vcmask 523264
    %v101 = vsel %vm99, %v40, 0
    %v104 = vsel %vm99, %v41, 0
    %106 = vmatprep.subr.mxu0 0.0
    %107 = vmatpush1.msra.mxu0 0.0
    %108 = vmatprep.subr.mxu0 0.0
    %109 = vmatpush1.msra.mxu0 0.0
    %110 = vmatprep.subr.mxu0 0.0
    %111 = vmatpush1.msra.mxu0 0.0
    %112 = vmatprep.subr.mxu0 0.0
    %113 = vmatpush1.msra.mxu0 0.0
    %114 = vmatprep.subr.mxu0 0.0
    %115 = vmatpush1.msra.mxu0 0.0
    %116 = vmatprep.subr.mxu0 0.0
    %117 = vmatpush1.msra.mxu0 0.0
    %118 = vmatprep.subr.mxu0 0.0
    %119 = vmatpush1.msra.mxu0 0.0
    %120 = vmatprep.subr.mxu0 0.0
    %121 = vmatpush1.msra.mxu0 0.0
    %122 = vmatprep.subr.mxu0 0.0
    %123 = vmatpush1.msra.mxu0 %v49
    %124 = vmatprep.subr.mxu0 0.0
    %125 = vmatpush1.msra.mxu0 %v48
    %126 = vmatprep.subr.mxu0 0.0
    %127 = vmatpush1.msra.mxu0 %v47
    %128 = vmatprep.subr.mxu0 0.0
    %129 = vmatpush1.msra.mxu0 %v46
    %130 = vmatprep.subr.mxu0 0.0
    %131 = vmatpush1.msra.mxu0 %v45
    %132 = vmatprep.subr.mxu0 0.0
    %133 = vmatpush1.msra.mxu0 %v44
    %134 = vmatprep.subr.mxu0 0.0
    %135 = vmatpush1.msra.mxu0 %v43
    %136 = vmatprep.subr.mxu0 0.0
    %137 = vmatpush1.msra.mxu0 %v42
    %138 = vmatprep.subr.mxu0 0.0
    %139 = vmatpush2.msra.mxu0 0.0
    %140 = vmatprep.subr.mxu0 0.0
    %141 = vmatpush2.msra.mxu0 0.0
    %142 = vmatprep.subr.mxu0 0.0
    %143 = vmatpush2.msra.mxu0 0.0
    %144 = vmatprep.subr.mxu0 0.0
    %145 = vmatpush2.msra.mxu0 0.0
    %146 = vmatprep.subr.mxu0 0.0
    %147 = vmatpush2.msra.mxu0 0.0
    %148 = vmatprep.subr.mxu0 0.0
    %149 = vmatpush2.msra.mxu0 0.0
    %150 = vmatprep.subr.mxu0 0.0
    %151 = vmatpush2.msra.mxu0 0.0
    %152 = vmatprep.subr.mxu0 0.0
    %153 = vmatpush2.msra.mxu0 0.0
    %154 = vmatprep.subr.mxu0 0.0
    %155 = vmatpush2.msra.mxu0 0.0
    %156 = vmatprep.subr.mxu0 0.0
    %157 = vmatpush2.msra.mxu0 0.0
    %158 = vmatprep.subr.mxu0 0.0
    %159 = vmatpush2.msra.mxu0 0.0
    %160 = vmatprep.subr.mxu0 0.0
    %161 = vmatpush2.msra.mxu0 0.0
    %162 = vmatprep.subr.mxu0 0.0
    %163 = vmatpush2.msra.mxu0 0.0
    %164 = vmatprep.subr.mxu0 0.0
    %165 = vmatpush2.msra.mxu0 0.0
    %166 = vmatprep.subr.mxu0 0.0
    %167 = vmatpush2.msra.mxu0 0.0
    %168 = vmatprep.subr.mxu0 0.0
    %169 = vmatpush2.msra.mxu0 0.0
    %170 = vmatprep.mubr.f32.mxu0 0.0
    %171 = vmatmul.mubr.f32.gmra.mxu0 %v101
    %v172 = vpop.f32.mrf.mxu0
    %v173 = vadd.f32 %v98, %v172
    %v174 = vpop.f32.mrf.mxu0
    %175 = vmatprep.mubr.f32.mxu0 0.0
    %176 = vmatmul.mubr.f32.gmra.mxu0 %v104
    %v177 = vpop.f32.mrf.mxu0
    %v178 = vadd.f32 %v98, %v177
    %v179 = vpop.f32.mrf.mxu0
    %180 = vdwg.mxu0
    %v181 = vlaneseq
    %v182 = vshrl.u32 %v181, 7
    %v183 = vsub.s32 1, %v182
    %v184 = vrot.slane %v93, %v183
    %vm185 = vcmask 261120
    %v187 = vsel %vm185, %v173, 0
    %v190 = vsel %vm185, %v178, 0
    %192 = vmatprep.subr.mxu0 0.0
    %193 = vmatpush1.msra.mxu0 0.0
    %194 = vmatprep.subr.mxu0 0.0
    %195 = vmatpush1.msra.mxu0 0.0
    %196 = vmatprep.subr.mxu0 0.0
    %197 = vmatpush1.msra.mxu0 0.0
    %198 = vmatprep.subr.mxu0 0.0
    %199 = vmatpush1.msra.mxu0 0.0
    %200 = vmatprep.subr.mxu0 0.0
    %201 = vmatpush1.msra.mxu0 0.0
    %202 = vmatprep.subr.mxu0 0.0
    %203 = vmatpush1.msra.mxu0 0.0
    %204 = vmatprep.subr.mxu0 0.0
    %205 = vmatpush1.msra.mxu0 0.0
    %206 = vmatprep.subr.mxu0 0.0
    %207 = vmatpush1.msra.mxu0 0.0
    %208 = vmatprep.subr.mxu0 0.0
    %209 = vmatpush1.msra.mxu0 0.0
    %210 = vmatprep.subr.mxu0 0.0
    %211 = vmatpush1.msra.mxu0 0.0
    %212 = vmatprep.subr.mxu0 0.0
    %213 = vmatpush1.msra.mxu0 0.0
    %214 = vmatprep.subr.mxu0 0.0
    %215 = vmatpush1.msra.mxu0 0.0
    %216 = vmatprep.subr.mxu0 0.0
    %217 = vmatpush1.msra.mxu0 %v53
    %218 = vmatprep.subr.mxu0 0.0
    %219 = vmatpush1.msra.mxu0 %v52
    %220 = vmatprep.subr.mxu0 0.0
    %221 = vmatpush1.msra.mxu0 %v51
    %222 = vmatprep.subr.mxu0 0.0
    %223 = vmatpush1.msra.mxu0 %v50
    %224 = vmatprep.subr.mxu0 0.0
    %225 = vmatpush2.msra.mxu0 0.0
    %226 = vmatprep.subr.mxu0 0.0
    %227 = vmatpush2.msra.mxu0 0.0
    %228 = vmatprep.subr.mxu0 0.0
    %229 = vmatpush2.msra.mxu0 0.0
    %230 = vmatprep.subr.mxu0 0.0
    %231 = vmatpush2.msra.mxu0 0.0
    %232 = vmatprep.subr.mxu0 0.0
    %233 = vmatpush2.msra.mxu0 0.0
    %234 = vmatprep.subr.mxu0 0.0
    %235 = vmatpush2.msra.mxu0 0.0
    %236 = vmatprep.subr.mxu0 0.0
    %237 = vmatpush2.msra.mxu0 0.0
    %238 = vmatprep.subr.mxu0 0.0
    %239 = vmatpush2.msra.mxu0 0.0
    %240 = vmatprep.subr.mxu0 0.0
    %241 = vmatpush2.msra.mxu0 0.0
    %242 = vmatprep.subr.mxu0 0.0
    %243 = vmatpush2.msra.mxu0 0.0
    %244 = vmatprep.subr.mxu0 0.0
    %245 = vmatpush2.msra.mxu0 0.0
    %246 = vmatprep.subr.mxu0 0.0
    %247 = vmatpush2.msra.mxu0 0.0
    %248 = vmatprep.subr.mxu0 0.0
    %249 = vmatpush2.msra.mxu0 0.0
    %250 = vmatprep.subr.mxu0 0.0
    %251 = vmatpush2.msra.mxu0 0.0
    %252 = vmatprep.subr.mxu0 0.0
    %253 = vmatpush2.msra.mxu0 0.0
    %254 = vmatprep.subr.mxu0 0.0
    %255 = vmatpush2.msra.mxu0 0.0
    %256 = vmatprep.mubr.f32.mxu0 0.0
    %257 = vmatmul.mubr.f32.gmra.mxu0 %v187
    %v258 = vpop.f32.mrf.mxu0
    %v259 = vadd.f32 %v184, %v258
    %v260 = vpop.f32.mrf.mxu0
    %261 = vmatprep.mubr.f32.mxu0 0.0
    %262 = vmatmul.mubr.f32.gmra.mxu0 %v190
    %v263 = vpop.f32.mrf.mxu0
    %v264 = vadd.f32 %v184, %v263
    %v265 = vpop.f32.mrf.mxu0
    %266 = vdwg.mxu0
    %v268 = vcombine.high %v94, %v94
    %v270 = vunpack.c.l.s4 1966171168
    %v271 = vunpack.c.0.s8 %v270
    %v272 = vlaneseq
    %v273 = vshrl.u32 %v272, 7
    %v274 = vsub.s32 %v271, %v273
    %v275 = vrot.slane %v268, %v274
    %v276 = vcombine.high %v275, %v275
    %v278 = vunpack.c.l.s4 1966171168
    %v279 = vunpack.c.0.s8 %v278
    %v280 = vlaneseq
    %v281 = vshrl.u32 %v280, 7
    %v282 = vsub.s32 %v279, %v281
    %v283 = vrot.slane %v275, %v282
    %v285 = vunpack.c.l.s4 1966171168
    %v286 = vunpack.c.0.s8 %v285
    %v287 = vlaneseq
    %v288 = vshrl.u32 %v287, 7
    %v289 = vsub.s32 %v286, %v288
    %v290 = vrot.slane %v276, %v289
    %v291 = vcombine.high %v283, %v283
    %v292 = vcombine.high %v290, %v290
    %v293 = vlaneseq
    %v294 = vshrl.u32 %v293, 7
    %v295 = vsub.s32 0, %v294
    %v296 = vrot.slane %v283, %v295
    %v297 = vlaneseq
    %v298 = vshrl.u32 %v297, 7
    %v299 = vsub.s32 0, %v298
    %v300 = vrot.slane %v290, %v299
    %v301 = vlaneseq
    %v302 = vshrl.u32 %v301, 7
    %v303 = vsub.s32 0, %v302
    %v304 = vrot.slane %v291, %v303
    %v305 = vlaneseq
    %v306 = vshrl.u32 %v305, 7
    %v307 = vsub.s32 0, %v306
    %v308 = vrot.slane %v292, %v307
    %v313 = vmul.f32 %v259, %v296
    %v314 = vmul.f32 %v264, %v296
    %v315 = vmul.f32 %v259, %v300
    %v316 = vmul.f32 %v264, %v300
    %v317 = vmul.f32 %v259, %v304
    %v318 = vmul.f32 %v264, %v304
    %v319 = vmul.f32 %v259, %v308
    %v320 = vmul.f32 %v264, %v308
    %323 = vrot.lane.b32.xlu0 %v259, 96
    %v324 = vpop.permute.xlu0 %323
    %325 = vrot.lane.b32.xlu0 %v264, 96
    %v326 = vpop.permute.xlu0 %325
    %v328 = vsel %vm185, %v313, 0
    %v331 = vsel %vm185, %v314, 0
    %v334 = vsel %vm185, %v315, 0
    %v337 = vsel %vm185, %v316, 0
    %v340 = vsel %vm185, %v317, 0
    %v343 = vsel %vm185, %v318, 0
    %v346 = vsel %vm185, %v319, 0
    %v349 = vsel %vm185, %v320, 0
    %v351 = vsel %vm185, %v324, 0
    %v353 = vsel %vm185, %v326, 0
    %355 = vmatprep.subr.mxu0 0.0
    %356 = vmatpush1.xpose.msra.mxu0 0.0
    %357 = vmatprep.subr.mxu0 0.0
    %358 = vmatpush1.xpose.msra.mxu0 0.0
    %359 = vmatprep.subr.mxu0 0.0
    %360 = vmatpush1.xpose.msra.mxu0 0.0
    %361 = vmatprep.subr.mxu0 0.0
    %362 = vmatpush1.xpose.msra.mxu0 0.0
    %363 = vmatprep.subr.mxu0 0.0
    %364 = vmatpush1.xpose.msra.mxu0 0.0
    %365 = vmatprep.subr.mxu0 0.0
    %366 = vmatpush1.xpose.msra.mxu0 0.0
    %367 = vmatprep.subr.mxu0 0.0
    %368 = vmatpush1.xpose.msra.mxu0 0.0
    %369 = vmatprep.subr.mxu0 0.0
    %370 = vmatpush1.xpose.msra.mxu0 0.0
    %371 = vmatprep.subr.mxu0 0.0
    %372 = vmatpush1.xpose.msra.mxu0 0.0
    %373 = vmatprep.subr.mxu0 0.0
    %374 = vmatpush1.xpose.msra.mxu0 0.0
    %375 = vmatprep.subr.mxu0 0.0
    %376 = vmatpush1.xpose.msra.mxu0 0.0
    %377 = vmatprep.subr.mxu0 0.0
    %378 = vmatpush1.xpose.msra.mxu0 0.0
    %379 = vmatprep.subr.mxu0 0.0
    %380 = vmatpush1.xpose.msra.mxu0 0.0
    %381 = vmatprep.subr.mxu0 0.0
    %382 = vmatpush1.xpose.msra.mxu0 0.0
    %383 = vmatprep.subr.mxu0 0.0
    %384 = vmatpush1.xpose.msra.mxu0 %v353
    %385 = vmatprep.subr.mxu0 0.0
    %386 = vmatpush1.xpose.msra.mxu0 %v351
    %387 = vmatprep.subr.mxu0 0.0
    %388 = vmatpush2.xpose.msra.mxu0 0.0
    %389 = vmatprep.subr.mxu0 0.0
    %390 = vmatpush2.xpose.msra.mxu0 0.0
    %391 = vmatprep.subr.mxu0 0.0
    %392 = vmatpush2.xpose.msra.mxu0 0.0
    %393 = vmatprep.subr.mxu0 0.0
    %394 = vmatpush2.xpose.msra.mxu0 0.0
    %395 = vmatprep.subr.mxu0 0.0
    %396 = vmatpush2.xpose.msra.mxu0 0.0
    %397 = vmatprep.subr.mxu0 0.0
    %398 = vmatpush2.xpose.msra.mxu0 0.0
    %399 = vmatprep.subr.mxu0 0.0
    %400 = vmatpush2.xpose.msra.mxu0 0.0
    %401 = vmatprep.subr.mxu0 0.0
    %402 = vmatpush2.xpose.msra.mxu0 0.0
    %403 = vmatprep.subr.mxu0 0.0
    %404 = vmatpush2.xpose.msra.mxu0 0.0
    %405 = vmatprep.subr.mxu0 0.0
    %406 = vmatpush2.xpose.msra.mxu0 0.0
    %407 = vmatprep.subr.mxu0 0.0
    %408 = vmatpush2.xpose.msra.mxu0 0.0
    %409 = vmatprep.subr.mxu0 0.0
    %410 = vmatpush2.xpose.msra.mxu0 0.0
    %411 = vmatprep.subr.mxu0 0.0
    %412 = vmatpush2.xpose.msra.mxu0 0.0
    %413 = vmatprep.subr.mxu0 0.0
    %414 = vmatpush2.xpose.msra.mxu0 0.0
    %415 = vmatprep.subr.mxu0 0.0
    %416 = vmatpush2.xpose.msra.mxu0 0.0
    %417 = vmatprep.subr.mxu0 0.0
    %418 = vmatpush2.xpose.msra.mxu0 0.0
    %419 = vmatprep.mubr.f32.mxu0 0.0
    %420 = vmatmul.mubr.f32.gmra.mxu0 %v328
    %v421 = vpop.f32.mrf.mxu0
    %v422 = vadd.f32 %v84, %v421
    %v423 = vpop.f32.mrf.mxu0
    %424 = vmatprep.mubr.f32.mxu0 0.0
    %425 = vmatmul.mubr.f32.gmra.mxu0 %v331
    %v426 = vpop.f32.mrf.mxu0
    %v427 = vadd.f32 %v85, %v426
    %v428 = vpop.f32.mrf.mxu0
    %429 = vmatprep.mubr.f32.mxu0 0.0
    %430 = vmatmul.mubr.f32.gmra.mxu0 %v334
    %v431 = vpop.f32.mrf.mxu0
    %v432 = vadd.f32 %v86, %v431
    %v433 = vpop.f32.mrf.mxu0
    %434 = vmatprep.mubr.f32.mxu0 0.0
    %435 = vmatmul.mubr.f32.gmra.mxu0 %v337
    %v436 = vpop.f32.mrf.mxu0
    %v437 = vadd.f32 %v87, %v436
    %v438 = vpop.f32.mrf.mxu0
    %439 = vmatprep.mubr.f32.mxu0 0.0
    %440 = vmatmul.mubr.f32.gmra.mxu0 %v340
    %v441 = vpop.f32.mrf.mxu0
    %v442 = vadd.f32 %v88, %v441
    %v443 = vpop.f32.mrf.mxu0
    %444 = vmatprep.mubr.f32.mxu0 0.0
    %445 = vmatmul.mubr.f32.gmra.mxu0 %v343
    %v446 = vpop.f32.mrf.mxu0
    %v447 = vadd.f32 %v89, %v446
    %v448 = vpop.f32.mrf.mxu0
    %449 = vmatprep.mubr.f32.mxu0 0.0
    %450 = vmatmul.mubr.f32.gmra.mxu0 %v346
    %v451 = vpop.f32.mrf.mxu0
    %v452 = vadd.f32 %v90, %v451
    %v453 = vpop.f32.mrf.mxu0
    %454 = vmatprep.mubr.f32.mxu0 0.0
    %455 = vmatmul.mubr.f32.gmra.mxu0 %v349
    %v456 = vpop.f32.mrf.mxu0
    %v457 = vadd.f32 %v91, %v456
    %v458 = vpop.f32.mrf.mxu0
    %459 = vdwg.mxu0
    %vm460 = vcmask 130048
    %v461 = vsel %vm460, %v422, -inf
    %462 = vmax.xlane.f32.xlu0 %v461
    %v463 = vpop.xlane.xlu0 %462
    %v464 = vsel %vm460, %v427, -inf
    %465 = vmax.xlane.f32.xlu0 %v464
    %v466 = vpop.xlane.xlu0 %465
    %v467 = vsel %vm460, %v432, -inf
    %468 = vmax.xlane.f32.xlu0 %v467
    %v469 = vpop.xlane.xlu0 %468
    %v470 = vsel %vm460, %v437, -inf
    %471 = vmax.xlane.f32.xlu0 %v470
    %v472 = vpop.xlane.xlu0 %471
    %v473 = vsel %vm460, %v442, -inf
    %474 = vmax.xlane.f32.xlu0 %v473
    %v475 = vpop.xlane.xlu0 %474
    %v476 = vsel %vm460, %v447, -inf
    %477 = vmax.xlane.f32.xlu0 %v476
    %v478 = vpop.xlane.xlu0 %477
    %v479 = vsel %vm460, %v452, -inf
    %480 = vmax.xlane.f32.xlu0 %v479
    %v481 = vpop.xlane.xlu0 %480
    %v482 = vsel %vm460, %v457, -inf
    %483 = vmax.xlane.f32.xlu0 %v482
    %v484 = vpop.xlane.xlu0 %483
    %v485 = vsub.f32 %v422, %v463
    %v486 = vsub.f32 %v427, %v466
    %v487 = vsub.f32 %v432, %v469
    %v488 = vsub.f32 %v437, %v472
    %v489 = vsub.f32 %v442, %v475
    %v490 = vsub.f32 %v447, %v478
    %v491 = vsub.f32 %v452, %v481
    %v492 = vsub.f32 %v457, %v484
    %v493 = vmul.f32 %v485, 1.442695
    %v494 = vpow.pop %v493
    %v495 = vmul.f32 %v486, 1.442695
    %v496 = vpow.pop %v495
    %v497 = vmul.f32 %v487, 1.442695
    %v498 = vpow.pop %v497
    %v499 = vmul.f32 %v488, 1.442695
    %v500 = vpow.pop %v499
    %v501 = vmul.f32 %v489, 1.442695
    %v502 = vpow.pop %v501
    %v503 = vmul.f32 %v490, 1.442695
    %v504 = vpow.pop %v503
    %v505 = vmul.f32 %v491, 1.442695
    %v506 = vpow.pop %v505
    %v507 = vmul.f32 %v492, 1.442695
    %v508 = vpow.pop %v507
    %v509 = vsel %vm460, %v494, 0.0
    %510 = vadd.xlane.f32.xlu0 %v509
    %v511 = vpop.xlane.xlu0 %510
    %v512 = vsel %vm460, %v496, 0.0
    %513 = vadd.xlane.f32.xlu0 %v512
    %v514 = vpop.xlane.xlu0 %513
    %v515 = vsel %vm460, %v498, 0.0
    %516 = vadd.xlane.f32.xlu0 %v515
    %v517 = vpop.xlane.xlu0 %516
    %v518 = vsel %vm460, %v500, 0.0
    %519 = vadd.xlane.f32.xlu0 %v518
    %v520 = vpop.xlane.xlu0 %519
    %v521 = vsel %vm460, %v502, 0.0
    %522 = vadd.xlane.f32.xlu0 %v521
    %v523 = vpop.xlane.xlu0 %522
    %v524 = vsel %vm460, %v504, 0.0
    %525 = vadd.xlane.f32.xlu0 %v524
    %v526 = vpop.xlane.xlu0 %525
    %v527 = vsel %vm460, %v506, 0.0
    %528 = vadd.xlane.f32.xlu0 %v527
    %v529 = vpop.xlane.xlu0 %528
    %v530 = vsel %vm460, %v508, 0.0
    %531 = vadd.xlane.f32.xlu0 %v530
    %v532 = vpop.xlane.xlu0 %531
    %v533 = vrcp.pop %v511
    %v534 = vmul.f32 %v494, %v533
    %v535 = vrcp.pop %v514
    %v536 = vmul.f32 %v496, %v535
    %v537 = vrcp.pop %v517
    %v538 = vmul.f32 %v498, %v537
    %v539 = vrcp.pop %v520
    %v540 = vmul.f32 %v500, %v539
    %v541 = vrcp.pop %v523
    %v542 = vmul.f32 %v502, %v541
    %v543 = vrcp.pop %v526
    %v544 = vmul.f32 %v504, %v543
    %v545 = vrcp.pop %v529
    %v546 = vmul.f32 %v506, %v545
    %v547 = vrcp.pop %v532
    %v548 = vmul.f32 %v508, %v547
    %549 = vrot.lane.b32.xlu0 %v259, 64
    %v550 = vpop.permute.xlu0 %549
    %551 = vrot.lane.b32.xlu0 %v264, 64
    %v552 = vpop.permute.xlu0 %551
    %v556 = vsel %vm460, %v534, 0
    %v559 = vsel %vm460, %v536, 0
    %v562 = vsel %vm460, %v538, 0
    %v565 = vsel %vm460, %v540, 0
    %v568 = vsel %vm460, %v542, 0
    %v571 = vsel %vm460, %v544, 0
    %v574 = vsel %vm460, %v546, 0
    %v577 = vsel %vm460, %v548, 0
    %579 = vmatprep.subr.mxu0 0.0
    %580 = vmatpush1.msra.mxu0 0.0
    %581 = vmatprep.subr.mxu0 0.0
    %582 = vmatpush1.msra.mxu0 0.0
    %583 = vmatprep.subr.mxu0 0.0
    %584 = vmatpush1.msra.mxu0 0.0
    %585 = vmatprep.subr.mxu0 0.0
    %586 = vmatpush1.msra.mxu0 0.0
    %587 = vmatprep.subr.mxu0 0.0
    %588 = vmatpush1.msra.mxu0 0.0
    %589 = vmatprep.subr.mxu0 0.0
    %590 = vmatpush1.msra.mxu0 0.0
    %591 = vmatprep.subr.mxu0 0.0
    %592 = vmatpush1.msra.mxu0 0.0
    %593 = vmatprep.subr.mxu0 0.0
    %594 = vmatpush1.msra.mxu0 0.0
    %595 = vmatprep.subr.mxu0 0.0
    %596 = vmatpush1.msra.mxu0 0.0
    %597 = vmatprep.subr.mxu0 0.0
    %598 = vmatpush1.msra.mxu0 0.0
    %599 = vmatprep.subr.mxu0 0.0
    %600 = vmatpush1.msra.mxu0 0.0
    %601 = vmatprep.subr.mxu0 0.0
    %602 = vmatpush1.msra.mxu0 0.0
    %603 = vmatprep.subr.mxu0 0.0
    %604 = vmatpush1.msra.mxu0 0.0
    %605 = vmatprep.subr.mxu0 0.0
    %606 = vmatpush1.msra.mxu0 0.0
    %607 = vmatprep.subr.mxu0 0.0
    %608 = vmatpush1.msra.mxu0 %v552
    %609 = vmatprep.subr.mxu0 0.0
    %610 = vmatpush1.msra.mxu0 %v550
    %611 = vmatprep.subr.mxu0 0.0
    %612 = vmatpush2.msra.mxu0 0.0
    %613 = vmatprep.subr.mxu0 0.0
    %614 = vmatpush2.msra.mxu0 0.0
    %615 = vmatprep.subr.mxu0 0.0
    %616 = vmatpush2.msra.mxu0 0.0
    %617 = vmatprep.subr.mxu0 0.0
    %618 = vmatpush2.msra.mxu0 0.0
    %619 = vmatprep.subr.mxu0 0.0
    %620 = vmatpush2.msra.mxu0 0.0
    %621 = vmatprep.subr.mxu0 0.0
    %622 = vmatpush2.msra.mxu0 0.0
    %623 = vmatprep.subr.mxu0 0.0
    %624 = vmatpush2.msra.mxu0 0.0
    %625 = vmatprep.subr.mxu0 0.0
    %626 = vmatpush2.msra.mxu0 0.0
    %627 = vmatprep.subr.mxu0 0.0
    %628 = vmatpush2.msra.mxu0 0.0
    %629 = vmatprep.subr.mxu0 0.0
    %630 = vmatpush2.msra.mxu0 0.0
    %631 = vmatprep.subr.mxu0 0.0
    %632 = vmatpush2.msra.mxu0 0.0
    %633 = vmatprep.subr.mxu0 0.0
    %634 = vmatpush2.msra.mxu0 0.0
    %635 = vmatprep.subr.mxu0 0.0
    %636 = vmatpush2.msra.mxu0 0.0
    %637 = vmatprep.subr.mxu0 0.0
    %638 = vmatpush2.msra.mxu0 0.0
    %639 = vmatprep.subr.mxu0 0.0
    %640 = vmatpush2.msra.mxu0 0.0
    %641 = vmatprep.subr.mxu0 0.0
    %642 = vmatpush2.msra.mxu0 0.0
    %643 = vmatprep.mubr.f32.mxu0 0.0
    %644 = vmatmul.mubr.f32.gmra.mxu0 %v556
    %v645 = vpop.f32.mrf.mxu0
    %v646 = vadd.f32 0.0, %v645
    %v647 = vpop.f32.mrf.mxu0
    %648 = vmatprep.mubr.f32.mxu0 0.0
    %649 = vmatmul.mubr.f32.gmra.mxu0 %v559
    %v650 = vpop.f32.mrf.mxu0
    %v651 = vadd.f32 0.0, %v650
    %v652 = vpop.f32.mrf.mxu0
    %653 = vmatprep.mubr.f32.mxu0 0.0
    %654 = vmatmul.mubr.f32.gmra.mxu0 %v562
    %v655 = vpop.f32.mrf.mxu0
    %v656 = vadd.f32 0.0, %v655
    %v657 = vpop.f32.mrf.mxu0
    %658 = vmatprep.mubr.f32.mxu0 0.0
    %659 = vmatmul.mubr.f32.gmra.mxu0 %v565
    %v660 = vpop.f32.mrf.mxu0
    %v661 = vadd.f32 0.0, %v660
    %v662 = vpop.f32.mrf.mxu0
    %663 = vmatprep.mubr.f32.mxu0 0.0
    %664 = vmatmul.mubr.f32.gmra.mxu0 %v568
    %v665 = vpop.f32.mrf.mxu0
    %v666 = vadd.f32 0.0, %v665
    %v667 = vpop.f32.mrf.mxu0
    %668 = vmatprep.mubr.f32.mxu0 0.0
    %669 = vmatmul.mubr.f32.gmra.mxu0 %v571
    %v670 = vpop.f32.mrf.mxu0
    %v671 = vadd.f32 0.0, %v670
    %v672 = vpop.f32.mrf.mxu0
    %673 = vmatprep.mubr.f32.mxu0 0.0
    %674 = vmatmul.mubr.f32.gmra.mxu0 %v574
    %v675 = vpop.f32.mrf.mxu0
    %v676 = vadd.f32 0.0, %v675
    %v677 = vpop.f32.mrf.mxu0
    %678 = vmatprep.mubr.f32.mxu0 0.0
    %679 = vmatmul.mubr.f32.gmra.mxu0 %v577
    %v680 = vpop.f32.mrf.mxu0
    %v681 = vadd.f32 0.0, %v680
    %v682 = vpop.f32.mrf.mxu0
    %683 = vdwg.mxu0
    %v684 = vmul.f32 %v646, %v296
    %v685 = vmul.f32 %v651, %v296
    %v686 = vmul.f32 %v656, %v300
    %v687 = vmul.f32 %v661, %v300
    %v688 = vmul.f32 %v666, %v304
    %v689 = vmul.f32 %v671, %v304
    %v690 = vmul.f32 %v676, %v308
    %v691 = vmul.f32 %v681, %v308
    %v692 = vsel %vm185, %v684, 0.0
    %v693 = vsel %vm185, %v686, 0.0
    %v694 = vadd.f32 %v692, %v693
    %v695 = vsel %vm185, %v688, 0.0
    %v696 = vadd.f32 %v694, %v695
    %v697 = vsel %vm185, %v690, 0.0
    %v698 = vadd.f32 %v696, %v697
    %v699 = vsel %vm185, %v685, 0.0
    %v700 = vsel %vm185, %v687, 0.0
    %v701 = vadd.f32 %v699, %v700
    %v702 = vsel %vm185, %v689, 0.0
    %v703 = vadd.f32 %v701, %v702
    %v704 = vsel %vm185, %v691, 0.0
    %v705 = vadd.f32 %v703, %v704
    %v706 = vlaneseq
    %v707 = vshrl.u32 %v706, 7
    %v708 = vsub.s32 2, %v707
    %v709 = vrot.slane %v93, %v708
    %v711 = vsel %vm185, %v698, 0
    %v714 = vsel %vm185, %v705, 0
    %716 = vmatprep.subr.mxu0 0.0
    %717 = vmatpush1.msra.mxu0 0.0
    %718 = vmatprep.subr.mxu0 0.0
    %719 = vmatpush1.msra.mxu0 0.0
    %720 = vmatprep.subr.mxu0 0.0
    %721 = vmatpush1.msra.mxu0 0.0
    %722 = vmatprep.subr.mxu0 0.0
    %723 = vmatpush1.msra.mxu0 0.0
    %724 = vmatprep.subr.mxu0 0.0
    %725 = vmatpush1.msra.mxu0 0.0
    %726 = vmatprep.subr.mxu0 0.0
    %727 = vmatpush1.msra.mxu0 0.0
    %728 = vmatprep.subr.mxu0 0.0
    %729 = vmatpush1.msra.mxu0 0.0
    %730 = vmatprep.subr.mxu0 0.0
    %731 = vmatpush1.msra.mxu0 0.0
    %732 = vmatprep.subr.mxu0 0.0
    %733 = vmatpush1.msra.mxu0 0.0
    %734 = vmatprep.subr.mxu0 0.0
    %735 = vmatpush1.msra.mxu0 0.0
    %736 = vmatprep.subr.mxu0 0.0
    %737 = vmatpush1.msra.mxu0 0.0
    %738 = vmatprep.subr.mxu0 0.0
    %739 = vmatpush1.msra.mxu0 0.0
    %740 = vmatprep.subr.mxu0 0.0
    %741 = vmatpush1.msra.mxu0 %v57
    %742 = vmatprep.subr.mxu0 0.0
    %743 = vmatpush1.msra.mxu0 %v56
    %744 = vmatprep.subr.mxu0 0.0
    %745 = vmatpush1.msra.mxu0 %v55
    %746 = vmatprep.subr.mxu0 0.0
    %747 = vmatpush1.msra.mxu0 %v54
    %748 = vmatprep.subr.mxu0 0.0
    %749 = vmatpush2.msra.mxu0 0.0
    %750 = vmatprep.subr.mxu0 0.0
    %751 = vmatpush2.msra.mxu0 0.0
    %752 = vmatprep.subr.mxu0 0.0
    %753 = vmatpush2.msra.mxu0 0.0
    %754 = vmatprep.subr.mxu0 0.0
    %755 = vmatpush2.msra.mxu0 0.0
    %756 = vmatprep.subr.mxu0 0.0
    %757 = vmatpush2.msra.mxu0 0.0
    %758 = vmatprep.subr.mxu0 0.0
    %759 = vmatpush2.msra.mxu0 0.0
    %760 = vmatprep.subr.mxu0 0.0
    %761 = vmatpush2.msra.mxu0 0.0
    %762 = vmatprep.subr.mxu0 0.0
    %763 = vmatpush2.msra.mxu0 0.0
    %764 = vmatprep.subr.mxu0 0.0
    %765 = vmatpush2.msra.mxu0 0.0
    %766 = vmatprep.subr.mxu0 0.0
    %767 = vmatpush2.msra.mxu0 0.0
    %768 = vmatprep.subr.mxu0 0.0
    %769 = vmatpush2.msra.mxu0 0.0
    %770 = vmatprep.subr.mxu0 0.0
    %771 = vmatpush2.msra.mxu0 0.0
    %772 = vmatprep.subr.mxu0 0.0
    %773 = vmatpush2.msra.mxu0 0.0
    %774 = vmatprep.subr.mxu0 0.0
    %775 = vmatpush2.msra.mxu0 0.0
    %776 = vmatprep.subr.mxu0 0.0
    %777 = vmatpush2.msra.mxu0 0.0
    %778 = vmatprep.subr.mxu0 0.0
    %779 = vmatpush2.msra.mxu0 0.0
    %780 = vmatprep.mubr.f32.mxu0 0.0
    %781 = vmatmul.mubr.f32.gmra.mxu0 %v711
    %v782 = vpop.f32.mrf.mxu0
    %v783 = vadd.f32 %v709, %v782
    %v784 = vpop.f32.mrf.mxu0
    %785 = vmatprep.mubr.f32.mxu0 0.0
    %786 = vmatmul.mubr.f32.gmra.mxu0 %v714
    %v787 = vpop.f32.mrf.mxu0
    %v788 = vadd.f32 %v709, %v787
    %v789 = vpop.f32.mrf.mxu0
    %790 = vdwg.mxu0
    %v791 = vadd.f32 %v783, %v783
    %v792 = vadd.f32 %v788, %v788
    %v793 = vsel %vm185, %v791, 0.0
    %794 = vadd.xlane.f32.xlu0 %v793
    %v795 = vpop.xlane.xlu0 %794
    %v796 = vsel %vm185, %v792, 0.0
    %797 = vadd.xlane.f32.xlu0 %v796
    %v798 = vpop.xlane.xlu0 %797
    %v799 = vrcp.pop 32.0
    %v800 = vmul.f32 %v795, %v799
    %v801 = vmul.f32 %v798, %v799
    %v802 = vsub.f32 %v791, %v800
    %v803 = vsub.f32 %v792, %v801
    %v804 = vmul.f32 %v802, %v802
    %v805 = vmul.f32 %v803, %v803
    %v806 = vsel %vm185, %v804, 0.0
    %807 = vadd.xlane.f32.xlu0 %v806
    %v808 = vpop.xlane.xlu0 %807
    %v809 = vsel %vm185, %v805, 0.0
    %810 = vadd.xlane.f32.xlu0 %v809
    %v811 = vpop.xlane.xlu0 %810
    %v812 = vmul.f32 %v808, %v799
    %v813 = vmul.f32 %v811, %v799
    %v814 = vadd.f32 %v812, 1e-05
    %v815 = vadd.f32 %v813, 1e-05
    %v816 = vrsqrt.pop %v814
    %v817 = vmul.f32 %v814, %v816
    %vm818 = vcmp.eq.f32.partialorder %v814, inf
    %v819 = vsel %vm818, %v814, %v817
    %vm820 = vcmp.eq.f32.partialorder %v814, 0.0
    %v821 = vand.u32 %v814, 2147483648
    %v822 = vsel %vm820, %v821, %v819
    %v823 = vrsqrt.pop %v815
    %v824 = vmul.f32 %v815, %v823
    %vm825 = vcmp.eq.f32.partialorder %v815, inf
    %v826 = vsel %vm825, %v815, %v824
    %vm827 = vcmp.eq.f32.partialorder %v815, 0.0
    %v828 = vand.u32 %v815, 2147483648
    %v829 = vsel %vm827, %v828, %v826
    %v830 = vrcp.pop %v822
    %v831 = vmul.f32 %v802, %v830
    %v832 = vrcp.pop %v829
    %v833 = vmul.f32 %v803, %v832
    %v834 = vlaneseq
    %v835 = vshrl.u32 %v834, 7
    %v836 = vsub.s32 3, %v835
    %v837 = vrot.slane %v93, %v836
    %v838 = vmul.f32 %v831, %v837
    %v839 = vmul.f32 %v833, %v837
    %v840 = vlaneseq
    %v841 = vshrl.u32 %v840, 7
    %v842 = vsub.s32 4, %v841
    %v843 = vrot.slane %v93, %v842
    %v844 = vadd.f32 %v838, %v843
    %v845 = vadd.f32 %v839, %v843
    %v846 = vlaneseq
    %v847 = vshrl.u32 %v846, 7
    %v848 = vsub.s32 7, %v847
    %v849 = vrot.slane %v93, %v848
    %v851 = vsel %vm185, %v844, 0
    %v854 = vsel %vm185, %v845, 0
    %856 = vmatprep.subr.mxu0 0.0
    %857 = vmatpush1.msra.mxu0 0.0
    %858 = vmatprep.subr.mxu0 0.0
    %859 = vmatpush1.msra.mxu0 0.0
    %860 = vmatprep.subr.mxu0 0.0
    %861 = vmatpush1.msra.mxu0 0.0
    %862 = vmatprep.subr.mxu0 0.0
    %863 = vmatpush1.msra.mxu0 0.0
    %864 = vmatprep.subr.mxu0 0.0
    %865 = vmatpush1.msra.mxu0 0.0
    %866 = vmatprep.subr.mxu0 0.0
    %867 = vmatpush1.msra.mxu0 0.0
    %868 = vmatprep.subr.mxu0 0.0
    %869 = vmatpush1.msra.mxu0 0.0
    %870 = vmatprep.subr.mxu0 0.0
    %871 = vmatpush1.msra.mxu0 0.0
    %872 = vmatprep.subr.mxu0 0.0
    %873 = vmatpush1.msra.mxu0 0.0
    %874 = vmatprep.subr.mxu0 0.0
    %875 = vmatpush1.msra.mxu0 0.0
    %876 = vmatprep.subr.mxu0 0.0
    %877 = vmatpush1.msra.mxu0 0.0
    %878 = vmatprep.subr.mxu0 0.0
    %879 = vmatpush1.msra.mxu0 0.0
    %880 = vmatprep.subr.mxu0 0.0
    %881 = vmatpush1.msra.mxu0 %v61
    %882 = vmatprep.subr.mxu0 0.0
    %883 = vmatpush1.msra.mxu0 %v60
    %884 = vmatprep.subr.mxu0 0.0
    %885 = vmatpush1.msra.mxu0 %v59
    %886 = vmatprep.subr.mxu0 0.0
    %887 = vmatpush1.msra.mxu0 %v58
    %888 = vmatprep.subr.mxu0 0.0
    %889 = vmatpush2.msra.mxu0 0.0
    %890 = vmatprep.subr.mxu0 0.0
    %891 = vmatpush2.msra.mxu0 0.0
    %892 = vmatprep.subr.mxu0 0.0
    %893 = vmatpush2.msra.mxu0 0.0
    %894 = vmatprep.subr.mxu0 0.0
    %895 = vmatpush2.msra.mxu0 0.0
    %896 = vmatprep.subr.mxu0 0.0
    %897 = vmatpush2.msra.mxu0 0.0
    %898 = vmatprep.subr.mxu0 0.0
    %899 = vmatpush2.msra.mxu0 0.0
    %900 = vmatprep.subr.mxu0 0.0
    %901 = vmatpush2.msra.mxu0 0.0
    %902 = vmatprep.subr.mxu0 0.0
    %903 = vmatpush2.msra.mxu0 0.0
    %904 = vmatprep.subr.mxu0 0.0
    %905 = vmatpush2.msra.mxu0 0.0
    %906 = vmatprep.subr.mxu0 0.0
    %907 = vmatpush2.msra.mxu0 0.0
    %908 = vmatprep.subr.mxu0 0.0
    %909 = vmatpush2.msra.mxu0 0.0
    %910 = vmatprep.subr.mxu0 0.0
    %911 = vmatpush2.msra.mxu0 0.0
    %912 = vmatprep.subr.mxu0 0.0
    %913 = vmatpush2.msra.mxu0 0.0
    %914 = vmatprep.subr.mxu0 0.0
    %915 = vmatpush2.msra.mxu0 0.0
    %916 = vmatprep.subr.mxu0 0.0
    %917 = vmatpush2.msra.mxu0 0.0
    %918 = vmatprep.subr.mxu0 0.0
    %919 = vmatpush2.msra.mxu0 0.0
    %920 = vmatprep.mubr.f32.mxu0 0.0
    %921 = vmatmul.mubr.f32.gmra.mxu0 %v851
    %v922 = vpop.f32.mrf.mxu0
    %v923 = vadd.f32 %v849, %v922
    %v924 = vpop.f32.mrf.mxu0
    %925 = vmatprep.mubr.f32.mxu0 0.0
    %926 = vmatmul.mubr.f32.gmra.mxu0 %v854
    %v927 = vpop.f32.mrf.mxu0
    %v928 = vadd.f32 %v849, %v927
    %v929 = vpop.f32.mrf.mxu0
    %930 = vdwg.mxu0
    %v931 = vmul.f32 %v923, 0.5
    %v932 = vmul.f32 %v928, 0.5
    %v933 = vrcp.pop 1.4142135
    %v934 = vmul.f32 %v923, %v933
    %v935 = vmul.f32 %v928, %v933
    %v936 = verf.f32.pop %v934
    %v937 = verf.f32.pop %v935
    %v938 = vadd.f32 %v936, 1.0
    %v939 = vadd.f32 %v937, 1.0
    %v940 = vmul.f32 %v931, %v938
    %v941 = vmul.f32 %v932, %v939
    %v942 = vlaneseq
    %v943 = vshrl.u32 %v942, 7
    %v944 = vsub.s32 0, %v943
    %v945 = vrot.slane %v94, %v944
    %946 = vmatprep.subr.mxu0 0.0
    %947 = vmatpush1.msra.mxu0 %v77
    %948 = vmatprep.subr.mxu0 0.0
    %949 = vmatpush1.msra.mxu0 %v76
    %950 = vmatprep.subr.mxu0 0.0
    %951 = vmatpush1.msra.mxu0 %v75
    %952 = vmatprep.subr.mxu0 0.0
    %953 = vmatpush1.msra.mxu0 %v74
    %954 = vmatprep.subr.mxu0 0.0
    %955 = vmatpush1.msra.mxu0 %v73
    %956 = vmatprep.subr.mxu0 0.0
    %957 = vmatpush1.msra.mxu0 %v72
    %958 = vmatprep.subr.mxu0 0.0
    %959 = vmatpush1.msra.mxu0 %v71
    %960 = vmatprep.subr.mxu0 0.0
    %961 = vmatpush1.msra.mxu0 %v70
    %962 = vmatprep.subr.mxu0 0.0
    %963 = vmatpush1.msra.mxu0 %v69
    %964 = vmatprep.subr.mxu0 0.0
    %965 = vmatpush1.msra.mxu0 %v68
    %966 = vmatprep.subr.mxu0 0.0
    %967 = vmatpush1.msra.mxu0 %v67
    %968 = vmatprep.subr.mxu0 0.0
    %969 = vmatpush1.msra.mxu0 %v66
    %970 = vmatprep.subr.mxu0 0.0
    %971 = vmatpush1.msra.mxu0 %v65
    %972 = vmatprep.subr.mxu0 0.0
    %973 = vmatpush1.msra.mxu0 %v64
    %974 = vmatprep.subr.mxu0 0.0
    %975 = vmatpush1.msra.mxu0 %v63
    %976 = vmatprep.subr.mxu0 0.0
    %977 = vmatpush1.msra.mxu0 %v62
    %978 = vmatprep.subr.mxu0 0.0
    %979 = vmatpush2.msra.mxu0 0.0
    %980 = vmatprep.subr.mxu0 0.0
    %981 = vmatpush2.msra.mxu0 0.0
    %982 = vmatprep.subr.mxu0 0.0
    %983 = vmatpush2.msra.mxu0 0.0
    %984 = vmatprep.subr.mxu0 0.0
    %985 = vmatpush2.msra.mxu0 0.0
    %986 = vmatprep.subr.mxu0 0.0
    %987 = vmatpush2.msra.mxu0 0.0
    %988 = vmatprep.subr.mxu0 0.0
    %989 = vmatpush2.msra.mxu0 0.0
    %990 = vmatprep.subr.mxu0 0.0
    %991 = vmatpush2.msra.mxu0 0.0
    %992 = vmatprep.subr.mxu0 0.0
    %993 = vmatpush2.msra.mxu0 0.0
    %994 = vmatprep.subr.mxu0 0.0
    %995 = vmatpush2.msra.mxu0 0.0
    %996 = vmatprep.subr.mxu0 0.0
    %997 = vmatpush2.msra.mxu0 0.0
    %998 = vmatprep.subr.mxu0 0.0
    %999 = vmatpush2.msra.mxu0 0.0
    %1000 = vmatprep.subr.mxu0 0.0
    %1001 = vmatpush2.msra.mxu0 0.0
    %1002 = vmatprep.subr.mxu0 0.0
    %1003 = vmatpush2.msra.mxu0 0.0
    %1004 = vmatprep.subr.mxu0 0.0
    %1005 = vmatpush2.msra.mxu0 0.0
    %1006 = vmatprep.subr.mxu0 0.0
    %1007 = vmatpush2.msra.mxu0 0.0
    %1008 = vmatprep.subr.mxu0 0.0
    %1009 = vmatpush2.msra.mxu0 0.0
    %1010 = vmatprep.mubr.f32.mxu0 0.0
    %1011 = vmatmul.mubr.f32.gmra.mxu0 %v940
    %v1012 = vpop.f32.mrf.mxu0
    %v1013 = vadd.f32 %v945, %v1012
    %v1014 = vpop.f32.mrf.mxu0
    %1015 = vmatprep.mubr.f32.mxu0 0.0
    %1016 = vmatmul.mubr.f32.gmra.mxu0 %v941
    %v1017 = vpop.f32.mrf.mxu0
    %v1018 = vadd.f32 %v945, %v1017
    %v1019 = vpop.f32.mrf.mxu0
    %1020 = vdwg.mxu0
    %v1021 = vadd.f32 %v844, %v1013
    %v1022 = vadd.f32 %v845, %v1018
    %v1023 = vsel %vm185, %v1021, 0.0
    %1024 = vadd.xlane.f32.xlu0 %v1023
    %v1025 = vpop.xlane.xlu0 %1024
    %v1026 = vsel %vm185, %v1022, 0.0
    %1027 = vadd.xlane.f32.xlu0 %v1026
    %v1028 = vpop.xlane.xlu0 %1027
    %v1029 = vmul.f32 %v1025, %v799
    %v1030 = vmul.f32 %v1028, %v799
    %v1031 = vsub.f32 %v1021, %v1029
    %v1032 = vsub.f32 %v1022, %v1030
    %v1033 = vmul.f32 %v1031, %v1031
    %v1034 = vmul.f32 %v1032, %v1032
    %v1035 = vsel %vm185, %v1033, 0.0
    %1036 = vadd.xlane.f32.xlu0 %v1035
    %v1037 = vpop.xlane.xlu0 %1036
    %v1038 = vsel %vm185, %v1034, 0.0
    %1039 = vadd.xlane.f32.xlu0 %v1038
    %v1040 = vpop.xlane.xlu0 %1039
    %v1041 = vmul.f32 %v1037, %v799
    %v1042 = vmul.f32 %v1040, %v799
    %v1043 = vadd.f32 %v1041, 1e-05
    %v1044 = vadd.f32 %v1042, 1e-05
    %v1045 = vrsqrt.pop %v1043
    %v1046 = vmul.f32 %v1043, %v1045
    %vm1047 = vcmp.eq.f32.partialorder %v1043, inf
    %v1048 = vsel %vm1047, %v1043, %v1046
    %vm1049 = vcmp.eq.f32.partialorder %v1043, 0.0
    %v1050 = vand.u32 %v1043, 2147483648
    %v1051 = vsel %vm1049, %v1050, %v1048
    %v1052 = vrsqrt.pop %v1044
    %v1053 = vmul.f32 %v1044, %v1052
    %vm1054 = vcmp.eq.f32.partialorder %v1044, inf
    %v1055 = vsel %vm1054, %v1044, %v1053
    %vm1056 = vcmp.eq.f32.partialorder %v1044, 0.0
    %v1057 = vand.u32 %v1044, 2147483648
    %v1058 = vsel %vm1056, %v1057, %v1055
    %v1059 = vrcp.pop %v1051
    %v1060 = vmul.f32 %v1031, %v1059
    %v1061 = vrcp.pop %v1058
    %v1062 = vmul.f32 %v1032, %v1061
    %v1063 = vlaneseq
    %v1064 = vshrl.u32 %v1063, 7
    %v1065 = vsub.s32 5, %v1064
    %v1066 = vrot.slane %v93, %v1065
    %v1067 = vmul.f32 %v1060, %v1066
    %v1068 = vmul.f32 %v1062, %v1066
    %v1069 = vlaneseq
    %v1070 = vshrl.u32 %v1069, 7
    %v1071 = vsub.s32 6, %v1070
    %v1072 = vrot.slane %v93, %v1071
    %v1073 = vadd.f32 %v1067, %v1072
    %v1074 = vadd.f32 %v1068, %v1072
    %v1076 = vsel %vm460, %v92, 0
    %1078 = vmatprep.subr.mxu0 0.0
    %1079 = vmatpush1.msra.mxu0 0.0
    %1080 = vmatprep.subr.mxu0 0.0
    %1081 = vmatpush1.msra.mxu0 0.0
    %1082 = vmatprep.subr.mxu0 0.0
    %1083 = vmatpush1.msra.mxu0 0.0
    %1084 = vmatprep.subr.mxu0 0.0
    %1085 = vmatpush1.msra.mxu0 0.0
    %1086 = vmatprep.subr.mxu0 0.0
    %1087 = vmatpush1.msra.mxu0 0.0
    %1088 = vmatprep.subr.mxu0 0.0
    %1089 = vmatpush1.msra.mxu0 0.0
    %1090 = vmatprep.subr.mxu0 0.0
    %1091 = vmatpush1.msra.mxu0 0.0
    %1092 = vmatprep.subr.mxu0 0.0
    %1093 = vmatpush1.msra.mxu0 0.0
    %1094 = vmatprep.subr.mxu0 0.0
    %1095 = vmatpush1.msra.mxu0 0.0
    %1096 = vmatprep.subr.mxu0 0.0
    %1097 = vmatpush1.msra.mxu0 0.0
    %1098 = vmatprep.subr.mxu0 0.0
    %1099 = vmatpush1.msra.mxu0 0.0
    %1100 = vmatprep.subr.mxu0 0.0
    %1101 = vmatpush1.msra.mxu0 0.0
    %1102 = vmatprep.subr.mxu0 0.0
    %1103 = vmatpush1.msra.mxu0 0.0
    %1104 = vmatprep.subr.mxu0 0.0
    %1105 = vmatpush1.msra.mxu0 0.0
    %1106 = vmatprep.subr.mxu0 0.0
    %1107 = vmatpush1.msra.mxu0 %v1074
    %1108 = vmatprep.subr.mxu0 0.0
    %1109 = vmatpush1.msra.mxu0 %v1073
    %1110 = vmatprep.subr.mxu0 0.0
    %1111 = vmatpush2.msra.mxu0 0.0
    %1112 = vmatprep.subr.mxu0 0.0
    %1113 = vmatpush2.msra.mxu0 0.0
    %1114 = vmatprep.subr.mxu0 0.0
    %1115 = vmatpush2.msra.mxu0 0.0
    %1116 = vmatprep.subr.mxu0 0.0
    %1117 = vmatpush2.msra.mxu0 0.0
    %1118 = vmatprep.subr.mxu0 0.0
    %1119 = vmatpush2.msra.mxu0 0.0
    %1120 = vmatprep.subr.mxu0 0.0
    %1121 = vmatpush2.msra.mxu0 0.0
    %1122 = vmatprep.subr.mxu0 0.0
    %1123 = vmatpush2.msra.mxu0 0.0
    %1124 = vmatprep.subr.mxu0 0.0
    %1125 = vmatpush2.msra.mxu0 0.0
    %1126 = vmatprep.subr.mxu0 0.0
    %1127 = vmatpush2.msra.mxu0 0.0
    %1128 = vmatprep.subr.mxu0 0.0
    %1129 = vmatpush2.msra.mxu0 0.0
    %1130 = vmatprep.subr.mxu0 0.0
    %1131 = vmatpush2.msra.mxu0 0.0
    %1132 = vmatprep.subr.mxu0 0.0
    %1133 = vmatpush2.msra.mxu0 0.0
    %1134 = vmatprep.subr.mxu0 0.0
    %1135 = vmatpush2.msra.mxu0 0.0
    %1136 = vmatprep.subr.mxu0 0.0
    %1137 = vmatpush2.msra.mxu0 0.0
    %1138 = vmatprep.subr.mxu0 0.0
    %1139 = vmatpush2.msra.mxu0 0.0
    %1140 = vmatprep.subr.mxu0 0.0
    %1141 = vmatpush2.msra.mxu0 0.0
    %1142 = vmatprep.mubr.f32.mxu0 0.0
    %1143 = vmatmul.mubr.f32.gmra.mxu0 %v1076
    %v1144 = vpop.f32.mrf.mxu0
    %v1145 = vadd.f32 0.0, %v1144
    %v1146 = vpop.f32.mrf.mxu0
    %1147 = vdwg.mxu0
    %v1148 = vlaneseq
    %v1149 = vshrl.u32 %v1148, 7
    %v1150 = vsub.s32 1, %v1149
    %v1151 = vrot.slane %v94, %v1150
    %v1153 = vsel %vm185, %v1145, 0
    %1155 = vmatprep.subr.mxu0 0.0
    %1156 = vmatpush1.msra.mxu0 0.0
    %1157 = vmatprep.subr.mxu0 0.0
    %1158 = vmatpush1.msra.mxu0 0.0
    %1159 = vmatprep.subr.mxu0 0.0
    %1160 = vmatpush1.msra.mxu0 0.0
    %1161 = vmatprep.subr.mxu0 0.0
    %1162 = vmatpush1.msra.mxu0 0.0
    %1163 = vmatprep.subr.mxu0 0.0
    %1164 = vmatpush1.msra.mxu0 0.0
    %1165 = vmatprep.subr.mxu0 0.0
    %1166 = vmatpush1.msra.mxu0 0.0
    %1167 = vmatprep.subr.mxu0 0.0
    %1168 = vmatpush1.msra.mxu0 0.0
    %1169 = vmatprep.subr.mxu0 0.0
    %1170 = vmatpush1.msra.mxu0 0.0
    %1171 = vmatprep.subr.mxu0 0.0
    %1172 = vmatpush1.msra.mxu0 0.0
    %1173 = vmatprep.subr.mxu0 0.0
    %1174 = vmatpush1.msra.mxu0 0.0
    %1175 = vmatprep.subr.mxu0 0.0
    %1176 = vmatpush1.msra.mxu0 0.0
    %1177 = vmatprep.subr.mxu0 0.0
    %1178 = vmatpush1.msra.mxu0 0.0
    %1179 = vmatprep.subr.mxu0 0.0
    %1180 = vmatpush1.msra.mxu0 %v81
    %1181 = vmatprep.subr.mxu0 0.0
    %1182 = vmatpush1.msra.mxu0 %v80
    %1183 = vmatprep.subr.mxu0 0.0
    %1184 = vmatpush1.msra.mxu0 %v79
    %1185 = vmatprep.subr.mxu0 0.0
    %1186 = vmatpush1.msra.mxu0 %v78
    %1187 = vmatprep.subr.mxu0 0.0
    %1188 = vmatpush2.msra.mxu0 0.0
    %1189 = vmatprep.subr.mxu0 0.0
    %1190 = vmatpush2.msra.mxu0 0.0
    %1191 = vmatprep.subr.mxu0 0.0
    %1192 = vmatpush2.msra.mxu0 0.0
    %1193 = vmatprep.subr.mxu0 0.0
    %1194 = vmatpush2.msra.mxu0 0.0
    %1195 = vmatprep.subr.mxu0 0.0
    %1196 = vmatpush2.msra.mxu0 0.0
    %1197 = vmatprep.subr.mxu0 0.0
    %1198 = vmatpush2.msra.mxu0 0.0
    %1199 = vmatprep.subr.mxu0 0.0
    %1200 = vmatpush2.msra.mxu0 0.0
    %1201 = vmatprep.subr.mxu0 0.0
    %1202 = vmatpush2.msra.mxu0 0.0
    %1203 = vmatprep.subr.mxu0 0.0
    %1204 = vmatpush2.msra.mxu0 0.0
    %1205 = vmatprep.subr.mxu0 0.0
    %1206 = vmatpush2.msra.mxu0 0.0
    %1207 = vmatprep.subr.mxu0 0.0
    %1208 = vmatpush2.msra.mxu0 0.0
    %1209 = vmatprep.subr.mxu0 0.0
    %1210 = vmatpush2.msra.mxu0 0.0
    %1211 = vmatprep.subr.mxu0 0.0
    %1212 = vmatpush2.msra.mxu0 0.0
    %1213 = vmatprep.subr.mxu0 0.0
    %1214 = vmatpush2.msra.mxu0 0.0
    %1215 = vmatprep.subr.mxu0 0.0
    %1216 = vmatpush2.msra.mxu0 0.0
    %1217 = vmatprep.subr.mxu0 0.0
    %1218 = vmatpush2.msra.mxu0 0.0
    %1219 = vmatprep.mubr.f32.mxu0 0.0
    %1220 = vmatmul.mubr.f32.gmra.mxu0 %v1153
    %v1221 = vpop.f32.mrf.mxu0
    %v1222 = vadd.f32 %v1151, %v1221
    %v1223 = vpop.f32.mrf.mxu0
    %1224 = vdwg.mxu0
    %v1225 = vmul.f32 %v1222, 0.5
    %v1226 = vmul.f32 %v1222, %v933
    %v1227 = verf.f32.pop %v1226
    %v1228 = vadd.f32 %v1227, 1.0
    %v1229 = vmul.f32 %v1225, %v1228
    %v1230 = vlaneseq
    %v1231 = vshrl.u32 %v1230, 7
    %v1232 = vsub.s32 2, %v1231
    %v1233 = vrot.slane %v94, %v1232
    %v1235 = vsel %vm460, %v1229, 0
    %1237 = vmatprep.subr.mxu0 0.0
    %1238 = vmatpush1.msra.mxu0 0.0
    %1239 = vmatprep.subr.mxu0 0.0
    %1240 = vmatpush1.msra.mxu0 0.0
    %1241 = vmatprep.subr.mxu0 0.0
    %1242 = vmatpush1.msra.mxu0 0.0
    %1243 = vmatprep.subr.mxu0 0.0
    %1244 = vmatpush1.msra.mxu0 0.0
    %1245 = vmatprep.subr.mxu0 0.0
    %1246 = vmatpush1.msra.mxu0 0.0
    %1247 = vmatprep.subr.mxu0 0.0
    %1248 = vmatpush1.msra.mxu0 0.0
    %1249 = vmatprep.subr.mxu0 0.0
    %1250 = vmatpush1.msra.mxu0 0.0
    %1251 = vmatprep.subr.mxu0 0.0
    %1252 = vmatpush1.msra.mxu0 0.0
    %1253 = vmatprep.subr.mxu0 0.0
    %1254 = vmatpush1.msra.mxu0 0.0
    %1255 = vmatprep.subr.mxu0 0.0
    %1256 = vmatpush1.msra.mxu0 0.0
    %1257 = vmatprep.subr.mxu0 0.0
    %1258 = vmatpush1.msra.mxu0 0.0
    %1259 = vmatprep.subr.mxu0 0.0
    %1260 = vmatpush1.msra.mxu0 0.0
    %1261 = vmatprep.subr.mxu0 0.0
    %1262 = vmatpush1.msra.mxu0 0.0
    %1263 = vmatprep.subr.mxu0 0.0
    %1264 = vmatpush1.msra.mxu0 0.0
    %1265 = vmatprep.subr.mxu0 0.0
    %1266 = vmatpush1.msra.mxu0 %v83
    %1267 = vmatprep.subr.mxu0 0.0
    %1268 = vmatpush1.msra.mxu0 %v82
    %1269 = vmatprep.subr.mxu0 0.0
    %1270 = vmatpush2.msra.mxu0 0.0
    %1271 = vmatprep.subr.mxu0 0.0
    %1272 = vmatpush2.msra.mxu0 0.0
    %1273 = vmatprep.subr.mxu0 0.0
    %1274 = vmatpush2.msra.mxu0 0.0
    %1275 = vmatprep.subr.mxu0 0.0
    %1276 = vmatpush2.msra.mxu0 0.0
    %1277 = vmatprep.subr.mxu0 0.0
    %1278 = vmatpush2.msra.mxu0 0.0
    %1279 = vmatprep.subr.mxu0 0.0
    %1280 = vmatpush2.msra.mxu0 0.0
    %1281 = vmatprep.subr.mxu0 0.0
    %1282 = vmatpush2.msra.mxu0 0.0
    %1283 = vmatprep.subr.mxu0 0.0
    %1284 = vmatpush2.msra.mxu0 0.0
    %1285 = vmatprep.subr.mxu0 0.0
    %1286 = vmatpush2.msra.mxu0 0.0
    %1287 = vmatprep.subr.mxu0 0.0
    %1288 = vmatpush2.msra.mxu0 0.0
    %1289 = vmatprep.subr.mxu0 0.0
    %1290 = vmatpush2.msra.mxu0 0.0
    %1291 = vmatprep.subr.mxu0 0.0
    %1292 = vmatpush2.msra.mxu0 0.0
    %1293 = vmatprep.subr.mxu0 0.0
    %1294 = vmatpush2.msra.mxu0 0.0
    %1295 = vmatprep.subr.mxu0 0.0
    %1296 = vmatpush2.msra.mxu0 0.0
    %1297 = vmatprep.subr.mxu0 0.0
    %1298 = vmatpush2.msra.mxu0 0.0
    %1299 = vmatprep.subr.mxu0 0.0
    %1300 = vmatpush2.msra.mxu0 0.0
    %1301 = vmatprep.mubr.f32.mxu0 0.0
    %1302 = vmatmul.mubr.f32.gmra.mxu0 %v1235
    %v1303 = vpop.f32.mrf.mxu0
    %v1304 = vadd.f32 %v1233, %v1303
    %v1305 = vpop.f32.mrf.mxu0
    %1306 = vdwg.mxu0
    %v1307 = vxor.u32 %v1304, 2147483648
    %v1308 = vmul.f32 %v1307, 1.442695
    %v1309 = vpow.pop %v1308
    %v1310 = vadd.f32 %v1309, 1.0
    %v1311 = vrcp.pop %v1310
    %v1312 = vmul.f32 1.0, %v1311
    %1313 = vst [vmem:[#allocation7] sm:$0xff] %v1312
    // Predicated region
    $region18: #{tpu_custom_call.1} parent=1 // pred_check
      _
    $region19: #{tpu_custom_call.1} parent=1 // pred_check_branch
      %1315 = sbr.rel (0) target = $region21
    $region20: #{tpu_custom_call.1} parent=1 // pred_region
      %s1317 = ssub.s32 128, 128
      %1318 = vsyncadd [#allocation4], %s1317
      %s1320 = sshll.u32 [#allocation7], 4
      %s1321 = int_to_ptr.vmem [resolvable:$true] %s1320
      %1323 = dma.vmem_to_hbm [thread:$0]  %s1321, 128, %s2, [#allocation4]
    $region21: #{tpu_custom_call.1} parent=1 // pred_fallthru
      _
    // Predicated region
    $region22: #{tpu_custom_call.1} parent=1 // pred_check
      _
    $region23: #{tpu_custom_call.1} parent=1 // pred_check_branch
      %1325 = sbr.rel (0) target = $region25
    $region24: #{tpu_custom_call.1} parent=1 // pred_region
      %1326 = dma.done [#allocation4], 128
    $region25: #{tpu_custom_call.1} parent=1 // pred_fallthru
      _
    %1327 = vsyncpa [#allocation3], 1
    %1328 = vsyncpa [#allocation6], 1
    %1329 = vsyncpa [#allocation4], 1

</llo_original>
